<compile_context>
chip_gen: v6e
topology: v6e:2x2x1
jax: 0.10.0
libtpu: 0.0.40
codegen_flags: <defaults>
</compile_context>

<pallas_src>
import jax
import jax.numpy as jnp
from jax.experimental import pallas as pl
from jax.experimental.pallas import tpu as pltpu


def _vmem_spec():
    return pl.BlockSpec(memory_space=pltpu.MemorySpace.VMEM)


# ----------------------------- GRU kernels ---------------------------------

def _gru_input_proj_kernel(x_ref, wih_ref, bih_ref, gi_ref):
    """gi[g] = x @ W_ih[g] + b_ih[g] for all timesteps at once (gate-major)."""
    x = x_ref[...]                                        # [S*B, E] bf16
    for g in range(3):
        gi_ref[g] = (jnp.dot(x, wih_ref[g],
                             preferred_element_type=jnp.float32)
                     + bih_ref[g])


def _gru_step_kernel(gi_ref, whh_ref, bhh_ref, h_out_ref, h_scr):
    """One GRU time step per inner grid iteration (PyTorch gate order r,z,n).

    gi_ref block : [3, bt, H]  precomputed input projection for this step
    whh_ref      : [3, H, H]   gate-major hidden weights (bf16)
    bhh_ref      : [3, 1, H]   gate-major hidden biases  (f32)
    """
    t = pl.program_id(1)

    @pl.when(t == 0)
    def _():
        h_scr[...] = jnp.zeros_like(h_scr)

    h_prev = h_scr[...]                                   # [bt, H] f32
    h_bf = h_prev.astype(jnp.bfloat16)

    gh_r = jnp.dot(h_bf, whh_ref[0], preferred_element_type=jnp.float32) + bhh_ref[0]
    gh_z = jnp.dot(h_bf, whh_ref[1], preferred_element_type=jnp.float32) + bhh_ref[1]
    gh_n = jnp.dot(h_bf, whh_ref[2], preferred_element_type=jnp.float32) + bhh_ref[2]

    r = jax.nn.sigmoid(gi_ref[0] + gh_r)
    z = jax.nn.sigmoid(gi_ref[1] + gh_z)
    n = jnp.tanh(gi_ref[2] + r * gh_n)                    # b_hn already in gh_n
    h_new = (1.0 - z) * n + z * h_prev
    h_scr[...] = h_new

    @pl.when(t == pl.num_programs(1) - 1)
    def _():
        h_out_ref[...] = h_new.astype(h_out_ref.dtype)


def gru_last_hidden(tok_emb_tm, wih_g, whh_g, bih_g, bhh_g, *, batch_tile=None):
    """nn.GRU(batch_first=True, bidirectional=False); returns out[:, -1].

    tok_emb_tm: time-major token embeddings [S, B, E] (bf16).
    """
    S, B, E = tok_emb_tm.shape
    H = whh_g.shape[-1]
    bt = B if batch_tile is None else min(batch_tile, B)
    assert B % bt == 0
    n_bt = B // bt

    # (1) Input projection for ALL timesteps in one matmul, gate-major output.
    x_flat = tok_emb_tm.reshape(S * B, E)                 # rows: t*B + b
    gi = pl.pallas_call(
        _gru_input_proj_kernel,
        out_shape=jax.ShapeDtypeStruct((3, S * B, H), jnp.float32),
        in_specs=[_vmem_spec(), _vmem_spec(), _vmem_spec()],
        out_specs=_vmem_spec(),
    )(x_flat, wih_g, bih_g)

    # (2) Sequential recurrence: only the H x H hidden matmuls remain in-loop.
    return pl.pallas_call(
        _gru_step_kernel,
        out_shape=jax.ShapeDtypeStruct((B, H), jnp.float32),
        grid=(n_bt, S),
        in_specs=[
            pl.BlockSpec((3, bt, H), lambda bi, t: (0, t * n_bt + bi, 0)),
            pl.BlockSpec((3, H, H), lambda bi, t: (0, 0, 0)),
            pl.BlockSpec((3, 1, H), lambda bi, t: (0, 0, 0)),
        ],
        out_specs=pl.BlockSpec((bt, H), lambda bi, t: (bi, 0)),
        scratch_shapes=[pltpu.VMEM((bt, H), jnp.float32)],
        compiler_params=pltpu.CompilerParams(
            dimension_semantics=("parallel", "arbitrary")),
    )(gi, whh_g, bhh_g)


# ------------------------- Fused MLP (BN folded) ----------------------------

def _make_fused_mlp_kernel(n_hidden):
    """(Linear+BN+Swish) x n_hidden, then final (lane-padded) linear, fused."""
    def kernel(x_ref, *refs):
        out_ref = refs[-1]
        h = x_ref[...]                                    # [bt, D0] f32
        for i in range(n_hidden):
            w = refs[2 * i][...]                          # [din, dout] bf16 (BN folded)
            b = refs[2 * i + 1][...]                      # [1, dout]   f32
            h = jnp.dot(h.astype(jnp.bfloat16), w,
                        preferred_element_type=jnp.float32) + b
            h = h * jax.nn.sigmoid(h)                     # Swish (f32)
        w_last = refs[2 * n_hidden][...]                  # [dlast, 128] bf16 (padded)
        b_last = refs[2 * n_hidden + 1][...]              # [1, 128]     f32
        out_ref[...] = jnp.dot(h.astype(jnp.bfloat16), w_last,
                               preferred_element_type=jnp.float32) + b_last
    return kernel


def fused_mlp(x, mlp_w, mlp_b, w_last, b_last, *, batch_tile=None):
    B, D0 = x.shape
    bt = B if batch_tile is None else min(batch_tile, B)
    assert B % bt == 0
    n_bt = B // bt
    n_hidden = len(mlp_w)
    out_w = w_last.shape[1]                               # 128 (lane-dense)

    weight_args = []
    in_specs = [pl.BlockSpec((bt, D0), lambda i: (i, 0))]
    for w, b in zip(mlp_w, mlp_b):
        weight_args += [w, b]
        in_specs += [pl.BlockSpec(w.shape, lambda i: (0, 0)),
                     pl.BlockSpec(b.shape, lambda i: (0, 0))]
    weight_args += [w_last, b_last]
    in_specs += [pl.BlockSpec(w_last.shape, lambda i: (0, 0)),
                 pl.BlockSpec(b_last.shape, lambda i: (0, 0))]

    return pl.pallas_call(
        _make_fused_mlp_kernel(n_hidden),
        out_shape=jax.ShapeDtypeStruct((B, out_w), jnp.float32),
        grid=(n_bt,),
        in_specs=in_specs,
        out_specs=pl.BlockSpec((bt, out_w), lambda i: (i, 0)),
        compiler_params=pltpu.CompilerParams(
            dimension_semantics=("parallel",)),
    )(x, *weight_args)


# ------------------------- params + forward (glue) --------------------------

def init_params(key, num_features, layers, embedding_table_shapes, gru_dim,
                emb_dim, vocab=119547):
    """PyTorch-layout parameters (as `Net` would hold them)."""
    keys = iter(jax.random.split(key, 128))
    p = {}
    p["emb_tables"] = [
        jax.random.normal(next(keys), (c, e), jnp.float32) * 0.05
        for c, e in embedding_table_shapes.values()
    ]
    emb_sizes = [e for _, e in embedding_table_shapes.values()]
    embedding_size = sum(emb_sizes)
    emb0 = emb_sizes[0]
    p["embed"] = jax.random.normal(next(keys), (vocab, emb_dim), jnp.float32) * 0.02
    # nn.GRU params, PyTorch layout (3H, in) / (3H, H), gate order r,z,n.
    p["gru_w_ih"] = jax.random.normal(next(keys), (3 * gru_dim, emb_dim), jnp.float32) * 0.05
    p["gru_w_hh"] = jax.random.normal(next(keys), (3 * gru_dim, gru_dim), jnp.float32) * 0.05
    p["gru_b_ih"] = jax.random.normal(next(keys), (3 * gru_dim,), jnp.float32) * 0.05
    p["gru_b_hh"] = jax.random.normal(next(keys), (3 * gru_dim,), jnp.float32) * 0.05
    # fn_layers input dim: num_features + gru_dim + sum_emb + emb0 + emb0.
    # (The original hardcodes "+128+128" because its first table has
    #  emb_size=128; here the first table's emb size is emb0.)
    layer_sizes = [num_features + gru_dim + embedding_size + emb0 + emb0] + list(layers)
    fn = []
    for i in range(len(layer_sizes) - 1):
        din, dout = layer_sizes[i], layer_sizes[i + 1]
        fn.append(dict(
            w=jax.random.normal(next(keys), (dout, din), jnp.float32) * 0.05,
            b=jax.random.normal(next(keys), (dout,), jnp.float32) * 0.05,
            gamma=1.0 + 0.1 * jax.random.normal(next(keys), (dout,), jnp.float32),
            beta=0.1 * jax.random.normal(next(keys), (dout,), jnp.float32),
            mean=0.1 * jax.random.normal(next(keys), (dout,), jnp.float32),
            var=jax.random.uniform(next(keys), (dout,), jnp.float32, 0.5, 1.5),
        ))
    p["fn_layers"] = fn
    p["fn_last_w"] = jax.random.normal(next(keys), (4, layer_sizes[-1]), jnp.float32) * 0.05
    p["fn_last_b"] = jax.random.normal(next(keys), (4,), jnp.float32) * 0.05
    return p


def prepare_params(p, eps=1e-5, pad_out=128):
    """One-time inference prep: transpose, fold BN, cast matmul operands bf16."""
    H = p["gru_w_hh"].shape[1]
    E = p["gru_w_ih"].shape[1]
    prep = {}
    prep["emb_tables"] = p["emb_tables"]                  # small, keep f32
    prep["embed"] = p["embed"].astype(jnp.bfloat16)       # big table: bf16 gathers
    # Gate-major GRU weights: [3, in, H] / [3, H, H] so no sub-128 lane slices.
    prep["wih_g"] = jnp.transpose(p["gru_w_ih"].reshape(3, H, E), (0, 2, 1)).astype(jnp.bfloat16)
    prep["whh_g"] = jnp.transpose(p["gru_w_hh"].reshape(3, H, H), (0, 2, 1)).astype(jnp.bfloat16)
    prep["bih_g"] = p["gru_b_ih"].reshape(3, 1, H).astype(jnp.float32)
    prep["bhh_g"] = p["gru_b_hh"].reshape(3, 1, H).astype(jnp.float32)
    # Fold BatchNorm (eval) into the dense weights/biases.
    mlp_w, mlp_b = [], []
    for lp in p["fn_layers"]:
        scale = lp["gamma"] * jax.lax.rsqrt(lp["var"] + eps)          # [dout]
        w_f = jnp.transpose(lp["w"]) * scale[None, :]                 # [din, dout]
        b_f = (lp["b"] - lp["mean"]) * scale + lp["beta"]             # [dout]
        mlp_w.append(w_f.astype(jnp.bfloat16))
        mlp_b.append(b_f.reshape(1, -1).astype(jnp.float32))
    prep["mlp_w"] = mlp_w
    prep["mlp_b"] = mlp_b
    # Lane-dense final linear: pad 4 -> pad_out output columns with zeros.
    d_last = p["fn_last_w"].shape[1]
    wl = jnp.zeros((d_last, pad_out), jnp.float32).at[:, :4].set(jnp.transpose(p["fn_last_w"]))
    bl = jnp.zeros((1, pad_out), jnp.float32).at[:, :4].set(p["fn_last_b"].reshape(1, 4))
    prep["w_last"] = wl.astype(jnp.bfloat16)
    prep["b_last"] = bl
    return prep


def net_forward(prep, x_cat, x_cont, bert_tok):
    tables = prep["emb_tables"]
    # TODO(synk): the categorical / token embedding gathers use XLA gather
    # (jnp indexing) rather than a dedicated Pallas DMA-gather kernel.
    a_emb = tables[0][x_cat[:, 0]]
    b_emb = tables[0][x_cat[:, 1]]
    mf = a_emb * b_emb
    # ConcatenatedEmbeddings: [layer0(col0)] + [layer_i(col_{i+1})]; dropout=id.
    cat_parts = [a_emb] + [t[x_cat[:, i + 1]] for i, t in enumerate(tables)]
    x_cat_emb = jnp.concatenate(cat_parts, axis=1)
    # Token embeddings gathered directly time-major (cheap int transpose).
    tok_emb_tm = prep["embed"][bert_tok.T]                # [S, B, E] bf16
    lstm_out = gru_last_hidden(tok_emb_tm, prep["wih_g"], prep["whh_g"],
                               prep["bih_g"], prep["bhh_g"])
    x = jnp.concatenate([x_cont, lstm_out, x_cat_emb, mf], axis=1)
    logits_pad = fused_mlp(x, prep["mlp_w"], prep["mlp_b"],
                           prep["w_last"], prep["b_last"])
    return logits_pad[:, :4]


if __name__ == "__main__":
    B, S = 8, 8
    num_features = 16
    emb_dim = 32
    gru_dim = 32
    embedding_table_shapes = {"a": (50, 32), "b": (30, 16), "c": (20, 16)}
    layers = [64, 32]
    vocab = 119547

    key = jax.random.PRNGKey(0)
    kp, kc, kf, kt = jax.random.split(key, 4)
    params = init_params(kp, num_features, layers, embedding_table_shapes,
                         gru_dim, emb_dim, vocab)
    prep = prepare_params(params)                         # one-time weight prep

    # x_cat needs num_tables + 1 columns (ConcatenatedEmbeddings uses col i+1
    # for table i, plus table 0 applied to col 0).
    n_cols = len(embedding_table_shapes) + 1
    max_card = min(c for c, _ in embedding_table_shapes.values())
    x_cat = jax.random.randint(kc, (B, n_cols), 0, max_card, dtype=jnp.int32)
    x_cont = jax.random.normal(kf, (B, num_features), jnp.float32)
    bert_tok = jax.random.randint(kt, (B, S), 0, vocab, dtype=jnp.int32)

    logit = jax.jit(net_forward)(prep, x_cat, x_cont, bert_tok)
    jax.block_until_ready(logit)
    assert logit.shape == (B, 4), logit.shape
    assert bool(jnp.all(jnp.isfinite(logit)))
    print("KERNEL_OK")
</pallas_src>

<mosaic_0001>
module attributes {stable_mosaic.version = 11 : i64} {
  func.func @_gru_input_proj_kernel(%arg0: memref<64x32xbf16, #tpu.memory_space<vmem>>, %arg1: memref<3x32x32xbf16, #tpu.memory_space<vmem>>, %arg2: memref<3x1x32xf32, #tpu.memory_space<vmem>>, %arg3: memref<3x64x32xf32, #tpu.memory_space<vmem>>) attributes {dimension_semantics = [], scalar_prefetch = 0 : i64, scratch_operands = 0 : i64, tpu.core_type = #tpu.core_type<tc>} {
    %c0 = arith.constant 0 : index
    %c0_0 = arith.constant 0 : index
    %0 = vector.load %arg0[%c0, %c0_0] : memref<64x32xbf16, #tpu.memory_space<vmem>>, vector<64x32xbf16>
    %c0_1 = arith.constant 0 : index
    %c0_2 = arith.constant 0 : index
    %c0_3 = arith.constant 0 : index
    %1 = vector.load %arg1[%c0_1, %c0_2, %c0_3] : memref<3x32x32xbf16, #tpu.memory_space<vmem>>, vector<1x32x32xbf16>
    %2 = vector.shape_cast %1 : vector<1x32x32xbf16> to vector<32x32xbf16>
    %cst = arith.constant dense<0.000000e+00> : vector<64x32xf32>
    %3 = tpu.matmul %0, %2, %cst {dimension_numbers = #tpu.dot_dimension_numbers<[1], [0], [0], [1], [0, 0, 1, 1], [], []>} : vector<64x32xbf16>, vector<32x32xbf16>, vector<64x32xf32> -> vector<64x32xf32>
    %c0_4 = arith.constant 0 : index
    %c0_5 = arith.constant 0 : index
    %c0_6 = arith.constant 0 : index
    %4 = vector.load %arg2[%c0_4, %c0_5, %c0_6] : memref<3x1x32xf32, #tpu.memory_space<vmem>>, vector<1x1x32xf32>
    %5 = vector.shape_cast %4 : vector<1x1x32xf32> to vector<1x32xf32>
    %6 = vector.broadcast %5 : vector<1x32xf32> to vector<64x32xf32>
    %7 = arith.addf %3, %6 : vector<64x32xf32>
    %c0_7 = arith.constant 0 : index
    %c0_8 = arith.constant 0 : index
    %c0_9 = arith.constant 0 : index
    %8 = vector.load %arg3[%c0_7, %c0_8, %c0_9] : memref<3x64x32xf32, #tpu.memory_space<vmem>>, vector<1x64x32xf32>
    %9 = vector.shape_cast %8 : vector<1x64x32xf32> to vector<64x32xf32>
    %10 = vector.shape_cast %7 : vector<64x32xf32> to vector<1x64x32xf32>
    tpu.vector_store %arg3[%c0_7, %c0_8, %c0_9], %10 {strides = array<i32>} : memref<3x64x32xf32, #tpu.memory_space<vmem>>, vector<1x64x32xf32>,
    %c1 = arith.constant 1 : index
    %c0_10 = arith.constant 0 : index
    %c0_11 = arith.constant 0 : index
    %11 = vector.load %arg1[%c1, %c0_10, %c0_11] : memref<3x32x32xbf16, #tpu.memory_space<vmem>>, vector<1x32x32xbf16>
    %12 = vector.shape_cast %11 : vector<1x32x32xbf16> to vector<32x32xbf16>
    %cst_12 = arith.constant dense<0.000000e+00> : vector<64x32xf32>
    %13 = tpu.matmul %0, %12, %cst_12 {dimension_numbers = #tpu.dot_dimension_numbers<[1], [0], [0], [1], [0, 0, 1, 1], [], []>} : vector<64x32xbf16>, vector<32x32xbf16>, vector<64x32xf32> -> vector<64x32xf32>
    %c1_13 = arith.constant 1 : index
    %c0_14 = arith.constant 0 : index
    %c0_15 = arith.constant 0 : index
    %14 = vector.load %arg2[%c1_13, %c0_14, %c0_15] : memref<3x1x32xf32, #tpu.memory_space<vmem>>, vector<1x1x32xf32>
    %15 = vector.shape_cast %14 : vector<1x1x32xf32> to vector<1x32xf32>
    %16 = vector.broadcast %15 : vector<1x32xf32> to vector<64x32xf32>
    %17 = arith.addf %13, %16 : vector<64x32xf32>
    %c1_16 = arith.constant 1 : index
    %c0_17 = arith.constant 0 : index
    %c0_18 = arith.constant 0 : index
    %18 = vector.load %arg3[%c1_16, %c0_17, %c0_18] : memref<3x64x32xf32, #tpu.memory_space<vmem>>, vector<1x64x32xf32>
    %19 = vector.shape_cast %18 : vector<1x64x32xf32> to vector<64x32xf32>
    %20 = vector.shape_cast %17 : vector<64x32xf32> to vector<1x64x32xf32>
    tpu.vector_store %arg3[%c1_16, %c0_17, %c0_18], %20 {strides = array<i32>} : memref<3x64x32xf32, #tpu.memory_space<vmem>>, vector<1x64x32xf32>,
    %c2 = arith.constant 2 : index
    %c0_19 = arith.constant 0 : index
    %c0_20 = arith.constant 0 : index
    %21 = vector.load %arg1[%c2, %c0_19, %c0_20] : memref<3x32x32xbf16, #tpu.memory_space<vmem>>, vector<1x32x32xbf16>
    %22 = vector.shape_cast %21 : vector<1x32x32xbf16> to vector<32x32xbf16>
    %cst_21 = arith.constant dense<0.000000e+00> : vector<64x32xf32>
    %23 = tpu.matmul %0, %22, %cst_21 {dimension_numbers = #tpu.dot_dimension_numbers<[1], [0], [0], [1], [0, 0, 1, 1], [], []>} : vector<64x32xbf16>, vector<32x32xbf16>, vector<64x32xf32> -> vector<64x32xf32>
    %c2_22 = arith.constant 2 : index
    %c0_23 = arith.constant 0 : index
    %c0_24 = arith.constant 0 : index
    %24 = vector.load %arg2[%c2_22, %c0_23, %c0_24] : memref<3x1x32xf32, #tpu.memory_space<vmem>>, vector<1x1x32xf32>
    %25 = vector.shape_cast %24 : vector<1x1x32xf32> to vector<1x32xf32>
    %26 = vector.broadcast %25 : vector<1x32xf32> to vector<64x32xf32>
    %27 = arith.addf %23, %26 : vector<64x32xf32>
    %c2_25 = arith.constant 2 : index
    %c0_26 = arith.constant 0 : index
    %c0_27 = arith.constant 0 : index
    %28 = vector.load %arg3[%c2_25, %c0_26, %c0_27] : memref<3x64x32xf32, #tpu.memory_space<vmem>>, vector<1x64x32xf32>
    %29 = vector.shape_cast %28 : vector<1x64x32xf32> to vector<64x32xf32>
    %30 = vector.shape_cast %27 : vector<64x32xf32> to vector<1x64x32xf32>
    tpu.vector_store %arg3[%c2_25, %c0_26, %c0_27], %30 {strides = array<i32>} : memref<3x64x32xf32, #tpu.memory_space<vmem>>, vector<1x64x32xf32>,
    return
  }
}

module attributes {stable_mosaic.version = 11 : i64} {
  func.func @_gru_step_kernel(%arg0: i32, %arg1: i32, %arg2: memref<3x8x32xf32, #tpu.memory_space<vmem>>, %arg3: memref<3x32x32xbf16, #tpu.memory_space<vmem>>, %arg4: memref<3x1x32xf32, #tpu.memory_space<vmem>>, %arg5: memref<8x32xf32, #tpu.memory_space<vmem>>, %arg6: memref<8x32xf32, #tpu.memory_space<vmem>>) attributes {dimension_semantics = [#tpu.dimension_semantics<parallel>, #tpu.dimension_semantics<arbitrary>], iteration_bounds = array<i64: 1, 8>, scalar_prefetch = 0 : i64, scratch_operands = 1 : i64, tpu.core_type = #tpu.core_type<tc>, window_params = [{transform_indices = @transform_0, window_bounds = array<i64: 3, 8, 32>}, {pipeline_mode = #tpu.pipeline_mode<synchronous>, transform_indices = @transform_1, window_bounds = array<i64: 3, 32, 32>}, {pipeline_mode = #tpu.pipeline_mode<synchronous>, transform_indices = @transform_2, window_bounds = array<i64: 3, 1, 32>}, {transform_indices = @transform_3, window_bounds = array<i64: 8, 32>}]} {
    %c0_i32 = arith.constant 0 : i32
    %0 = arith.cmpi eq, %arg1, %c0_i32 : i32
    %1 = arith.extui %0 : i1 to i32
    %c0_i32_0 = arith.constant 0 : i32
    %2 = arith.cmpi ne, %1, %c0_i32_0 : i32
    scf.if %2 {
      %cst_35 = arith.constant 0.000000e+00 : f32
      %56 = vector.broadcast %cst_35 : f32 to vector<8x32xf32>
      %c0_36 = arith.constant 0 : index
      %c0_37 = arith.constant 0 : index
      %57 = vector.load %arg6[%c0_36, %c0_37] : memref<8x32xf32, #tpu.memory_space<vmem>>, vector<8x32xf32>
      tpu.vector_store %arg6[%c0_36, %c0_37], %56 {strides = array<i32>} : memref<8x32xf32, #tpu.memory_space<vmem>>, vector<8x32xf32>,
    } else {
    }
    %c0 = arith.constant 0 : index
    %c0_1 = arith.constant 0 : index
    %3 = vector.load %arg6[%c0, %c0_1] : memref<8x32xf32, #tpu.memory_space<vmem>>, vector<8x32xf32>
    %4 = arith.truncf %3 : vector<8x32xf32> to vector<8x32xbf16>
    %c0_2 = arith.constant 0 : index
    %c0_3 = arith.constant 0 : index
    %c0_4 = arith.constant 0 : index
    %5 = vector.load %arg3[%c0_2, %c0_3, %c0_4] : memref<3x32x32xbf16, #tpu.memory_space<vmem>>, vector<1x32x32xbf16>
    %6 = vector.shape_cast %5 : vector<1x32x32xbf16> to vector<32x32xbf16>
    %cst = arith.constant dense<0.000000e+00> : vector<8x32xf32>
    %7 = tpu.matmul %4, %6, %cst {dimension_numbers = #tpu.dot_dimension_numbers<[1], [0], [0], [1], [0, 0, 1, 1], [], []>} : vector<8x32xbf16>, vector<32x32xbf16>, vector<8x32xf32> -> vector<8x32xf32>
    %c0_5 = arith.constant 0 : index
    %c0_6 = arith.constant 0 : index
    %c0_7 = arith.constant 0 : index
    %8 = vector.load %arg4[%c0_5, %c0_6, %c0_7] : memref<3x1x32xf32, #tpu.memory_space<vmem>>, vector<1x1x32xf32>
    %9 = vector.shape_cast %8 : vector<1x1x32xf32> to vector<1x32xf32>
    %10 = vector.broadcast %9 : vector<1x32xf32> to vector<8x32xf32>
    %11 = arith.addf %7, %10 : vector<8x32xf32>
    %c1 = arith.constant 1 : index
    %c0_8 = arith.constant 0 : index
    %c0_9 = arith.constant 0 : index
    %12 = vector.load %arg3[%c1, %c0_8, %c0_9] : memref<3x32x32xbf16, #tpu.memory_space<vmem>>, vector<1x32x32xbf16>
    %13 = vector.shape_cast %12 : vector<1x32x32xbf16> to vector<32x32xbf16>
    %cst_10 = arith.constant dense<0.000000e+00> : vector<8x32xf32>
    %14 = tpu.matmul %4, %13, %cst_10 {dimension_numbers = #tpu.dot_dimension_numbers<[1], [0], [0], [1], [0, 0, 1, 1], [], []>} : vector<8x32xbf16>, vector<32x32xbf16>, vector<8x32xf32> -> vector<8x32xf32>
    %c1_11 = arith.constant 1 : index
    %c0_12 = arith.constant 0 : index
    %c0_13 = arith.constant 0 : index
    %15 = vector.load %arg4[%c1_11, %c0_12, %c0_13] : memref<3x1x32xf32, #tpu.memory_space<vmem>>, vector<1x1x32xf32>
    %16 = vector.shape_cast %15 : vector<1x1x32xf32> to vector<1x32xf32>
    %17 = vector.broadcast %16 : vector<1x32xf32> to vector<8x32xf32>
    %18 = arith.addf %14, %17 : vector<8x32xf32>
    %c2 = arith.constant 2 : index
    %c0_14 = arith.constant 0 : index
    %c0_15 = arith.constant 0 : index
    %19 = vector.load %arg3[%c2, %c0_14, %c0_15] : memref<3x32x32xbf16, #tpu.memory_space<vmem>>, vector<1x32x32xbf16>
    %20 = vector.shape_cast %19 : vector<1x32x32xbf16> to vector<32x32xbf16>
    %cst_16 = arith.constant dense<0.000000e+00> : vector<8x32xf32>
    %21 = tpu.matmul %4, %20, %cst_16 {dimension_numbers = #tpu.dot_dimension_numbers<[1], [0], [0], [1], [0, 0, 1, 1], [], []>} : vector<8x32xbf16>, vector<32x32xbf16>, vector<8x32xf32> -> vector<8x32xf32>
    %c2_17 = arith.constant 2 : index
    %c0_18 = arith.constant 0 : index
    %c0_19 = arith.constant 0 : index
    %22 = vector.load %arg4[%c2_17, %c0_18, %c0_19] : memref<3x1x32xf32, #tpu.memory_space<vmem>>, vector<1x1x32xf32>
    %23 = vector.shape_cast %22 : vector<1x1x32xf32> to vector<1x32xf32>
    %24 = vector.broadcast %23 : vector<1x32xf32> to vector<8x32xf32>
    %25 = arith.addf %21, %24 : vector<8x32xf32>
    %c0_20 = arith.constant 0 : index
    %c0_21 = arith.constant 0 : index
    %c0_22 = arith.constant 0 : index
    %26 = vector.load %arg2[%c0_20, %c0_21, %c0_22] : memref<3x8x32xf32, #tpu.memory_space<vmem>>, vector<1x8x32xf32>
    %27 = vector.shape_cast %26 : vector<1x8x32xf32> to vector<8x32xf32>
    %28 = arith.addf %27, %11 : vector<8x32xf32>
    %29 = arith.negf %28 : vector<8x32xf32>
    %30 = math.exp %29 : vector<8x32xf32>
    %cst_23 = arith.constant 1.000000e+00 : f32
    %31 = vector.broadcast %cst_23 : f32 to vector<8x32xf32>
    %32 = arith.addf %31, %30 : vector<8x32xf32>
    %33 = arith.divf %31, %32 : vector<8x32xf32>
    %c1_24 = arith.constant 1 : index
    %c0_25 = arith.constant 0 : index
    %c0_26 = arith.constant 0 : index
    %34 = vector.load %arg2[%c1_24, %c0_25, %c0_26] : memref<3x8x32xf32, #tpu.memory_space<vmem>>, vector<1x8x32xf32>
    %35 = vector.shape_cast %34 : vector<1x8x32xf32> to vector<8x32xf32>
    %36 = arith.addf %35, %18 : vector<8x32xf32>
    %37 = arith.negf %36 : vector<8x32xf32>
    %38 = math.exp %37 : vector<8x32xf32>
    %cst_27 = arith.constant 1.000000e+00 : f32
    %39 = vector.broadcast %cst_27 : f32 to vector<8x32xf32>
    %40 = arith.addf %39, %38 : vector<8x32xf32>
    %41 = arith.divf %39, %40 : vector<8x32xf32>
    %c2_28 = arith.constant 2 : index
    %c0_29 = arith.constant 0 : index
    %c0_30 = arith.constant 0 : index
    %42 = vector.load %arg2[%c2_28, %c0_29, %c0_30] : memref<3x8x32xf32, #tpu.memory_space<vmem>>, vector<1x8x32xf32>
    %43 = vector.shape_cast %42 : vector<1x8x32xf32> to vector<8x32xf32>
    %44 = arith.mulf %33, %25 : vector<8x32xf32>
    %45 = arith.addf %43, %44 : vector<8x32xf32>
    %46 = math.tanh %45 : vector<8x32xf32>
    %cst_31 = arith.constant 1.000000e+00 : f32
    %47 = vector.broadcast %cst_31 : f32 to vector<8x32xf32>
    %48 = arith.subf %47, %41 : vector<8x32xf32>
    %49 = arith.mulf %48, %46 : vector<8x32xf32>
    %50 = arith.mulf %41, %3 : vector<8x32xf32>
    %51 = arith.addf %49, %50 : vector<8x32xf32>
    %c0_32 = arith.constant 0 : index
    %c0_33 = arith.constant 0 : index
    %52 = vector.load %arg6[%c0_32, %c0_33] : memref<8x32xf32, #tpu.memory_space<vmem>>, vector<8x32xf32>
    tpu.vector_store %arg6[%c0_32, %c0_33], %51 {strides = array<i32>} : memref<8x32xf32, #tpu.memory_space<vmem>>, vector<8x32xf32>,
    %c7_i32 = arith.constant 7 : i32
    %53 = arith.cmpi eq, %arg1, %c7_i32 : i32
    %54 = arith.extui %53 : i1 to i32
    %c0_i32_34 = arith.constant 0 : i32
    %55 = arith.cmpi ne, %54, %c0_i32_34 : i32
    scf.if %55 {
      %c0_35 = arith.constant 0 : index
      %c0_36 = arith.constant 0 : index
      %56 = vector.load %arg5[%c0_35, %c0_36] : memref<8x32xf32, #tpu.memory_space<vmem>>, vector<8x32xf32>
      tpu.vector_store %arg5[%c0_35, %c0_36], %51 {strides = array<i32>} : memref<8x32xf32, #tpu.memory_space<vmem>>, vector<8x32xf32>,
    } else {
    }
    return
  }
  func.func @transform_0(%arg0: i32, %arg1: i32) -> (i32, i32, i32) {
    %c1_i32 = arith.constant 1 : i32
    %0 = arith.muli %arg1, %c1_i32 : i32
    %1 = arith.addi %0, %arg0 : i32
    %c0_i32 = arith.constant 0 : i32
    %c0_i32_0 = arith.constant 0 : i32
    %c0_i32_1 = arith.constant 0 : i32
    return %c0_i32, %1, %c0_i32_0 : i32, i32, i32
  }
  func.func @transform_1(%arg0: i32, %arg1: i32) -> (i32, i32, i32) {
    %c0_i32 = arith.constant 0 : i32
    %c0_i32_0 = arith.constant 0 : i32
    %c0_i32_1 = arith.constant 0 : i32
    %c0_i32_2 = arith.constant 0 : i32
    return %c0_i32, %c0_i32_0, %c0_i32_1 : i32, i32, i32
  }
  func.func @transform_2(%arg0: i32, %arg1: i32) -> (i32, i32, i32) {
    %c0_i32 = arith.constant 0 : i32
    %c0_i32_0 = arith.constant 0 : i32
    %c0_i32_1 = arith.constant 0 : i32
    %c0_i32_2 = arith.constant 0 : i32
    return %c0_i32, %c0_i32_0, %c0_i32_1 : i32, i32, i32
  }
  func.func @transform_3(%arg0: i32, %arg1: i32) -> (i32, i32) {
    %c0_i32 = arith.constant 0 : i32
    %c0_i32_0 = arith.constant 0 : i32
    return %arg0, %c0_i32 : i32, i32
  }
}

module attributes {stable_mosaic.version = 11 : i64} {
  func.func @kernel(%arg0: i32, %arg1: memref<8x176xf32, #tpu.memory_space<vmem>>, %arg2: memref<176x64xbf16, #tpu.memory_space<vmem>>, %arg3: memref<1x64xf32, #tpu.memory_space<vmem>>, %arg4: memref<64x32xbf16, #tpu.memory_space<vmem>>, %arg5: memref<1x32xf32, #tpu.memory_space<vmem>>, %arg6: memref<32x128xbf16, #tpu.memory_space<vmem>>, %arg7: memref<1x128xf32, #tpu.memory_space<vmem>>, %arg8: memref<8x128xf32, #tpu.memory_space<vmem>>) attributes {dimension_semantics = [#tpu.dimension_semantics<parallel>], iteration_bounds = array<i64: 1>, scalar_prefetch = 0 : i64, scratch_operands = 0 : i64, tpu.core_type = #tpu.core_type<tc>, window_params = [{transform_indices = @transform_0, window_bounds = array<i64: 8, 176>}, {pipeline_mode = #tpu.pipeline_mode<synchronous>, transform_indices = @transform_1, window_bounds = array<i64: 176, 64>}, {pipeline_mode = #tpu.pipeline_mode<synchronous>, transform_indices = @transform_2, window_bounds = array<i64: 1, 64>}, {pipeline_mode = #tpu.pipeline_mode<synchronous>, transform_indices = @transform_3, window_bounds = array<i64: 64, 32>}, {pipeline_mode = #tpu.pipeline_mode<synchronous>, transform_indices = @transform_4, window_bounds = array<i64: 1, 32>}, {pipeline_mode = #tpu.pipeline_mode<synchronous>, transform_indices = @transform_5, window_bounds = array<i64: 32, 128>}, {pipeline_mode = #tpu.pipeline_mode<synchronous>, transform_indices = @transform_6, window_bounds = array<i64: 1, 128>}, {transform_indices = @transform_7, window_bounds = array<i64: 8, 128>}]} {
    %c0 = arith.constant 0 : index
    %c0_0 = arith.constant 0 : index
    %0 = vector.load %arg1[%c0, %c0_0] : memref<8x176xf32, #tpu.memory_space<vmem>>, vector<8x176xf32>
    %c0_1 = arith.constant 0 : index
    %c0_2 = arith.constant 0 : index
    %1 = vector.load %arg2[%c0_1, %c0_2] : memref<176x64xbf16, #tpu.memory_space<vmem>>, vector<176x64xbf16>
    %c0_3 = arith.constant 0 : index
    %c0_4 = arith.constant 0 : index
    %2 = vector.load %arg3[%c0_3, %c0_4] : memref<1x64xf32, #tpu.memory_space<vmem>>, vector<1x64xf32>
    %3 = arith.truncf %0 : vector<8x176xf32> to vector<8x176xbf16>
    %cst = arith.constant dense<0.000000e+00> : vector<8x64xf32>
    %4 = tpu.matmul %3, %1, %cst {dimension_numbers = #tpu.dot_dimension_numbers<[1], [0], [0], [1], [0, 0, 1, 1], [], []>} : vector<8x176xbf16>, vector<176x64xbf16>, vector<8x64xf32> -> vector<8x64xf32>
    %5 = vector.broadcast %2 : vector<1x64xf32> to vector<8x64xf32>
    %6 = arith.addf %4, %5 : vector<8x64xf32>
    %7 = arith.negf %6 : vector<8x64xf32>
    %8 = math.exp %7 : vector<8x64xf32>
    %cst_5 = arith.constant 1.000000e+00 : f32
    %9 = vector.broadcast %cst_5 : f32 to vector<8x64xf32>
    %10 = arith.addf %9, %8 : vector<8x64xf32>
    %11 = arith.divf %9, %10 : vector<8x64xf32>
    %12 = arith.mulf %6, %11 : vector<8x64xf32>
    %c0_6 = arith.constant 0 : index
    %c0_7 = arith.constant 0 : index
    %13 = vector.load %arg4[%c0_6, %c0_7] : memref<64x32xbf16, #tpu.memory_space<vmem>>, vector<64x32xbf16>
    %c0_8 = arith.constant 0 : index
    %c0_9 = arith.constant 0 : index
    %14 = vector.load %arg5[%c0_8, %c0_9] : memref<1x32xf32, #tpu.memory_space<vmem>>, vector<1x32xf32>
    %15 = arith.truncf %12 : vector<8x64xf32> to vector<8x64xbf16>
    %cst_10 = arith.constant dense<0.000000e+00> : vector<8x32xf32>
    %16 = tpu.matmul %15, %13, %cst_10 {dimension_numbers = #tpu.dot_dimension_numbers<[1], [0], [0], [1], [0, 0, 1, 1], [], []>} : vector<8x64xbf16>, vector<64x32xbf16>, vector<8x32xf32> -> vector<8x32xf32>
    %17 = vector.broadcast %14 : vector<1x32xf32> to vector<8x32xf32>
    %18 = arith.addf %16, %17 : vector<8x32xf32>
    %19 = arith.negf %18 : vector<8x32xf32>
    %20 = math.exp %19 : vector<8x32xf32>
    %cst_11 = arith.constant 1.000000e+00 : f32
    %21 = vector.broadcast %cst_11 : f32 to vector<8x32xf32>
    %22 = arith.addf %21, %20 : vector<8x32xf32>
    %23 = arith.divf %21, %22 : vector<8x32xf32>
    %24 = arith.mulf %18, %23 : vector<8x32xf32>
    %c0_12 = arith.constant 0 : index
    %c0_13 = arith.constant 0 : index
    %25 = vector.load %arg6[%c0_12, %c0_13] : memref<32x128xbf16, #tpu.memory_space<vmem>>, vector<32x128xbf16>
    %c0_14 = arith.constant 0 : index
    %c0_15 = arith.constant 0 : index
    %26 = vector.load %arg7[%c0_14, %c0_15] : memref<1x128xf32, #tpu.memory_space<vmem>>, vector<1x128xf32>
    %27 = arith.truncf %24 : vector<8x32xf32> to vector<8x32xbf16>
    %cst_16 = arith.constant dense<0.000000e+00> : vector<8x128xf32>
    %28 = tpu.matmul %27, %25, %cst_16 {dimension_numbers = #tpu.dot_dimension_numbers<[1], [0], [0], [1], [0, 0, 1, 1], [], []>} : vector<8x32xbf16>, vector<32x128xbf16>, vector<8x128xf32> -> vector<8x128xf32>
    %29 = vector.broadcast %26 : vector<1x128xf32> to vector<8x128xf32>
    %30 = arith.addf %28, %29 : vector<8x128xf32>
    %c0_17 = arith.constant 0 : index
    %c0_18 = arith.constant 0 : index
    %31 = vector.load %arg8[%c0_17, %c0_18] : memref<8x128xf32, #tpu.memory_space<vmem>>, vector<8x128xf32>
    tpu.vector_store %arg8[%c0_17, %c0_18], %30 {strides = array<i32>} : memref<8x128xf32, #tpu.memory_space<vmem>>, vector<8x128xf32>,
    return
  }
  func.func @transform_0(%arg0: i32) -> (i32, i32) {
    %c0_i32 = arith.constant 0 : i32
    %c0_i32_0 = arith.constant 0 : i32
    return %arg0, %c0_i32 : i32, i32
  }
  func.func @transform_1(%arg0: i32) -> (i32, i32) {
    %c0_i32 = arith.constant 0 : i32
    %c0_i32_0 = arith.constant 0 : i32
    %c0_i32_1 = arith.constant 0 : i32
    return %c0_i32, %c0_i32_0 : i32, i32
  }
  func.func @transform_2(%arg0: i32) -> (i32, i32) {
    %c0_i32 = arith.constant 0 : i32
    %c0_i32_0 = arith.constant 0 : i32
    %c0_i32_1 = arith.constant 0 : i32
    return %c0_i32, %c0_i32_0 : i32, i32
  }
  func.func @transform_3(%arg0: i32) -> (i32, i32) {
    %c0_i32 = arith.constant 0 : i32
    %c0_i32_0 = arith.constant 0 : i32
    %c0_i32_1 = arith.constant 0 : i32
    return %c0_i32, %c0_i32_0 : i32, i32
  }
  func.func @transform_4(%arg0: i32) -> (i32, i32) {
    %c0_i32 = arith.constant 0 : i32
    %c0_i32_0 = arith.constant 0 : i32
    %c0_i32_1 = arith.constant 0 : i32
    return %c0_i32, %c0_i32_0 : i32, i32
  }
  func.func @transform_5(%arg0: i32) -> (i32, i32) {
    %c0_i32 = arith.constant 0 : i32
    %c0_i32_0 = arith.constant 0 : i32
    %c0_i32_1 = arith.constant 0 : i32
    return %c0_i32, %c0_i32_0 : i32, i32
  }
  func.func @transform_6(%arg0: i32) -> (i32, i32) {
    %c0_i32 = arith.constant 0 : i32
    %c0_i32_0 = arith.constant 0 : i32
    %c0_i32_1 = arith.constant 0 : i32
    return %c0_i32, %c0_i32_0 : i32, i32
  }
  func.func @transform_7(%arg0: i32) -> (i32, i32) {
    %c0_i32 = arith.constant 0 : i32
    %c0_i32_0 = arith.constant 0 : i32
    return %arg0, %c0_i32 : i32, i32
  }
}

</mosaic_0001>

<llo_original>
// kernel: mul.1
$region0: #{mul.1}
  #allocation0 [shape = 's32[1]{0}', space=sflag, size = 0x4, scoped, tag = 'scoped memory for mul.1']
  %s0 = inlined_call_operand.vmem [shape: f32[8,32], index: 0, kind: input, shape index: {}]
  %s1 = inlined_call_operand.vmem [shape: f32[8,32], index: 1, kind: input, shape index: {}]
  %s2 = inlined_call_operand.vmem [shape: f32[8,32], index: 2, kind: output, shape index: {}]
  %v3 = vld [vmem:[%s0] sm:$0xff]
  %v4 = vld [vmem:[%s1] sm:$0xff]
  %5 = xla_tuple %v3, %v4
  %6 = xla_tuple %5
  %v7 = vmul.f32 %v3, %v4
  %8 = xla_tuple %v7
  %9 = vst [vmem:[%s2] sm:$0xff] %v7

// kernel: net_forward.4
$region0: #{net_forward.4}
  #allocation0 [shape = 'u32[]', space=smem, size = 0x4, offset = 0x4, fixed_abs, tag = 'smem constant byte address 0x4 - core index']
  #allocation1 [shape = 'u32[144,128]{1,0:T(1,128)}', space=vmem, size = 0x12000, scoped, tag = 'internal scratch']
  #allocation2 [shape = 'f32[8,32]{1,0:T(8,128)}', space=vmem, size = 0x1000, scoped, tag = 'scratch operand']
  %s0 = inlined_call_operand.vmem [shape: f32[3,64,32], index: 0, kind: input, shape index: {}]
  %s1 = inlined_call_operand.vmem [shape: bf16[3,32,32], index: 1, kind: input, shape index: {}]
  %s2 = inlined_call_operand.vmem [shape: f32[3,1,32], index: 2, kind: input, shape index: {}]
  %s3 = inlined_call_operand.vmem [shape: f32[8,32], index: 3, kind: output, shape index: {}]
  %s4 = sld [smem:[#allocation0]]
  $region91: #{net_forward.4} parent=0
    _
  %s6 = ssub.s32 1, %s4
  %s7 = scalar_select 0, %s6, %s4
  $region1: #{net_forward.4} parent=0
    #allocation3 [shape = 'u8[24576]{0}', space=vmem, size = 0x6000, scoped, tag = 'input window, operand 0']
    loop: start=0, step=1, limit=10
    $region2: #{net_forward.4} parent=1 // loop_pre_header
      _
    $region3: #{net_forward.4} parent=1 // loop_header
      %s9 = sphi 0, %s13
      %p10 = scmp.ge.s32.totalorder %s9, 10
      %s16 = sphi 0, %s28
      %s17 = sphi 0, %s24
      %s18 = sphi 0, %s16
      %s19 = sphi 0, %s17
      %s20 = sphi 0, %s18
      %s21 = sphi 0, %s19
      %s33 = sphi 0, %s35
      %s36 = sphi 0, %s33
      %s37 = sphi 0, %s36
      %s53 = sphi 0, %s37
      %s57 = sphi 0, %s57
      %s59 = sphi 0, %s57
      %s60 = sphi 0, %s59
      %s74 = sphi 0, %s60
      %s78 = sphi 0, %s78
      %s80 = sphi 0, %s78
      %s81 = sphi 0, %s80
      %s95 = sphi 0, %s81
      %s101 = sphi 0, %s103
      %s104 = sphi 0, %s101
      %s105 = sphi 0, %s104
      %s121 = sphi 0, %s105
    $region4: #{net_forward.4} parent=1 // loop_header_branch
      %12 = sbr.rel (%p10) target = $region8
    $region5: #{net_forward.4} parent=1 // loop_body
      %s14 = ssub.s32 %s9, 1
      %s15 = ssub.s32 %s9, 2
      %s22 = sadd.s32 1, %s17
      %p23 = scmp.ge.s32.totalorder %s22, 8
      %s24 = scalar_select %p23, 0, %s22
      %s25 = sadd.s32 1, %s16
      %s26 = scalar_select %p23, %s25, %s16
      %p27 = scmp.ge.s32.totalorder %s26, 1
      %s28 = scalar_select %p27, 0, %s26
      %s29 = sadd.s32 %s17, %s16
      %s30 = sadd.s32 %s24, %s28
      %s31 = ssub.s32 %s29, %s30
      %p32 = scmp.eq.s32.totalorder %s31, 0
      %s34 = sadd.s32 %s33, 1
      %s35 = scalar_select %p32, %s33, %s34
      %p38 = pneg %p32
      %p39 = scmp.eq.s32.totalorder %s9, 7
      %p40 = por %p38, %p39
      %p41 = scmp.ne.s32.totalorder %s33, %s36
      %p42 = scmp.eq.s32.totalorder %s9, 0
      %p43 = por %p41, %p42
      %p44 = scmp.ne.s32.totalorder %s33, %s36
      %p45 = scmp.eq.s32.totalorder %s14, 7
      %p46 = por %p44, %p45
      %p47 = scmp.ne.s32.totalorder %s36, %s37
      %p48 = scmp.eq.s32.totalorder %s14, 0
      %p49 = por %p47, %p48
      %p50 = scmp.ne.s32.totalorder %s36, %s37
      %p51 = scmp.eq.s32.totalorder %s15, 7
      %p52 = por %p50, %p51
      %p54 = scmp.ne.s32.totalorder %s37, %s53
      %p55 = scmp.eq.s32.totalorder %s15, 0
      %p56 = por %p54, %p55
      %s58 = sadd.s32 %s57, 1
      %p61 = scmp.eq.s32.totalorder %s9, 7
      %p62 = scmp.ne.s32.totalorder %s57, %s59
      %p63 = scmp.eq.s32.totalorder %s9, 0
      %p64 = por %p62, %p63
      %p65 = scmp.ne.s32.totalorder %s57, %s59
      %p66 = scmp.eq.s32.totalorder %s14, 7
      %p67 = por %p65, %p66
      %p68 = scmp.ne.s32.totalorder %s59, %s60
      %p69 = scmp.eq.s32.totalorder %s14, 0
      %p70 = por %p68, %p69
      %p71 = scmp.ne.s32.totalorder %s59, %s60
      %p72 = scmp.eq.s32.totalorder %s15, 7
      %p73 = por %p71, %p72
      %p75 = scmp.ne.s32.totalorder %s60, %s74
      %p76 = scmp.eq.s32.totalorder %s15, 0
      %p77 = por %p75, %p76
      %s79 = sadd.s32 %s78, 1
      %p82 = scmp.eq.s32.totalorder %s9, 7
      %p83 = scmp.ne.s32.totalorder %s78, %s80
      %p84 = scmp.eq.s32.totalorder %s9, 0
      %p85 = por %p83, %p84
      %p86 = scmp.ne.s32.totalorder %s78, %s80
      %p87 = scmp.eq.s32.totalorder %s14, 7
      %p88 = por %p86, %p87
      %p89 = scmp.ne.s32.totalorder %s80, %s81
      %p90 = scmp.eq.s32.totalorder %s14, 0
      %p91 = por %p89, %p90
      %p92 = scmp.ne.s32.totalorder %s80, %s81
      %p93 = scmp.eq.s32.totalorder %s15, 7
      %p94 = por %p92, %p93
      %p96 = scmp.ne.s32.totalorder %s81, %s95
      %p97 = scmp.eq.s32.totalorder %s15, 0
      %p98 = por %p96, %p97
      %s99 = ssub.s32 %s16, %s28
      %p100 = scmp.eq.s32.totalorder %s99, 0
      %s102 = sadd.s32 %s101, 1
      %s103 = scalar_select %p100, %s101, %s102
      %p106 = pneg %p100
      %p107 = scmp.eq.s32.totalorder %s9, 7
      %p108 = por %p106, %p107
      %p109 = scmp.ne.s32.totalorder %s101, %s104
      %p110 = scmp.eq.s32.totalorder %s9, 0
      %p111 = por %p109, %p110
      %p112 = scmp.ne.s32.totalorder %s101, %s104
      %p113 = scmp.eq.s32.totalorder %s14, 7
      %p114 = por %p112, %p113
      %p115 = scmp.ne.s32.totalorder %s104, %s105
      %p116 = scmp.eq.s32.totalorder %s14, 0
      %p117 = por %p115, %p116
      %p118 = scmp.ne.s32.totalorder %s104, %s105
      %p119 = scmp.eq.s32.totalorder %s15, 7
      %p120 = por %p118, %p119
      %p122 = scmp.ne.s32.totalorder %s105, %s121
      %p123 = scmp.eq.s32.totalorder %s15, 0
      %p124 = por %p122, %p123
      %p125 = scmp.le.s32.totalorder 1, %s9
      %p126 = scmp.lt.s32.totalorder %s9, 9
      %p127 = pnand %p125, %p126
      %p128 = pneg %p127
      // Predicated region
      $region9: #{net_forward.4} parent=5 // pred_check
        _
      $region10: #{net_forward.4} parent=5 // pred_check_branch
        %130 = sbr.rel (%p127) target = $region12
      $region11: #{net_forward.4} parent=5 // pred_region
        %s131 = ssub.s32 %s9, 1
        // Predicated region
        $region13: #{net_forward.4} parent=11 // pred_check
          %p132 = pneg %p70
        $region14: #{net_forward.4} parent=11 // pred_check_branch
          %134 = sbr.rel (%p132) target = $region16
        $region15: #{net_forward.4} parent=11 // pred_region
          _
        $region16: #{net_forward.4} parent=11 // pred_fallthru
          _
        // Predicated region
        $region17: #{net_forward.4} parent=11 // pred_check
          %p135 = pneg %p91
        $region18: #{net_forward.4} parent=11 // pred_check_branch
          %137 = sbr.rel (%p135) target = $region20
        $region19: #{net_forward.4} parent=11 // pred_region
          _
        $region20: #{net_forward.4} parent=11 // pred_fallthru
          _
      $region12: #{net_forward.4} parent=5 // pred_fallthru
        _
      %p138 = scmp.lt.s32.totalorder %s9, 8
      // Predicated region
      $region21: #{net_forward.4} parent=5 // pred_check
        %p139 = pneg %p138
      $region22: #{net_forward.4} parent=5 // pred_check_branch
        %141 = sbr.rel (%p139) target = $region24
      $region23: #{net_forward.4} parent=5 // pred_region
        // Predicated region
        $region25: #{net_forward.4} parent=23 // pred_check
          %p142 = pneg %p43
        $region26: #{net_forward.4} parent=23 // pred_check_branch
          %144 = sbr.rel (%p142) target = $region28
        $region27: #{net_forward.4} parent=23 // pred_region
          %s145 = sand.u32 %s33, 1
          %s146 = sand.u32 %s33, 1
          %s147 = smul.addr %s146, 24
          %s148 = scalar_lea.vmem [#allocation3], %s147
          %s149 = sadd.s32 %s17, %s16
          %s150 = smul.addr %s149, 8
          %s151 = scalar_lea.vmem %s0, %s150
          // Predicated region
          $region29: #{net_forward.4} parent=27 // pred_check
            _
          $region30: #{net_forward.4} parent=27 // pred_check_branch
            %153 = sbr.rel (0) target = $region32
          $region31: #{net_forward.4} parent=27 // pred_region
            // Predicated region
            $region33: #{net_forward.4} parent=31 // pred_check
              _
            $region34: #{net_forward.4} parent=31 // pred_check_branch
              %155 = sbr.rel (0) target = $region36
            $region35: #{net_forward.4} parent=31 // pred_region
              // Predicated region
              $region48: #{net_forward.4} parent=35 // pred_check
                _
              $region49: #{net_forward.4} parent=35 // pred_check_branch
                %175 = sbr.rel (0) target = $region51
              $region50: #{net_forward.4} parent=35 // pred_region
                loop: start=0, step=1, limit=1
                $region52: #{net_forward.4} parent=50 // loop_pre_header
                  _
                $region53: #{net_forward.4} parent=50 // loop_header
                  %s177 = sphi 0, %s181
                  %p178 = scmp.ge.s32.totalorder %s177, 1
                  %s182 = sphi %s151, %s151
                  %s183 = sphi %s148, %s148
                $region54: #{net_forward.4} parent=50 // loop_header_branch
                  %180 = sbr.rel (%p178) target = $region58
                $region55: #{net_forward.4} parent=50 // loop_body
                  %v184 = vld [vmem:[%s182] sm:$0xff]
                  %185 = vst [vmem:[%s183] sm:$0xff] %v184
                  %v186 = vld [vmem:[%s182 + $0x40] sm:$0xff]
                  %187 = vst [vmem:[%s183 + $0x8] sm:$0xff] %v186
                  %v188 = vld [vmem:[%s182 + $0x80] sm:$0xff]
                  %189 = vst [vmem:[%s183 + $0x10] sm:$0xff] %v188
                $region56: #{net_forward.4} parent=50 // loop_footer
                  %s181 = sadd.s32 1, %s177
                $region57: #{net_forward.4} parent=50 // loop_footer_branch
                  %176 = sbr.rel target = $region53
                $region58: #{net_forward.4} parent=50 // loop_exit
                  _
              $region51: #{net_forward.4} parent=35 // pred_fallthru
                _
              // Predicated region
              $region59: #{net_forward.4} parent=35 // pred_check
                _
              $region60: #{net_forward.4} parent=35 // pred_check_branch
                %191 = sbr.rel target = $region62
              $region61: #{net_forward.4} parent=35 // pred_region
                _
              $region62: #{net_forward.4} parent=35 // pred_fallthru
                _
            $region36: #{net_forward.4} parent=31 // pred_fallthru
              _
            // Predicated region
            $region37: #{net_forward.4} parent=31 // pred_check
              _
            $region38: #{net_forward.4} parent=31 // pred_check_branch
              %157 = sbr.rel target = $region40
            $region39: #{net_forward.4} parent=31 // pred_region
              %s159 = ssub.s32 256, 1
              loop: start=0, step=1, limit=1
              $region41: #{net_forward.4} parent=39 // loop_pre_header
                _
              $region42: #{net_forward.4} parent=39 // loop_header
                %s161 = sphi 0, %s165
                %p162 = scmp.ge.s32.totalorder %s161, 1
                %s166 = sphi %s151, %s151
                %s167 = sphi %s148, %s148
              $region43: #{net_forward.4} parent=39 // loop_header_branch
                %164 = sbr.rel (%p162) target = $region47
              $region44: #{net_forward.4} parent=39 // loop_body
                %v168 = vld [vmem:[%s166] sm:%s159]
                %169 = vst [vmem:[%s167] sm:%s159] %v168
                %v170 = vld [vmem:[%s166 + $0x40] sm:%s159]
                %171 = vst [vmem:[%s167 + $0x8] sm:%s159] %v170
                %v172 = vld [vmem:[%s166 + $0x80] sm:%s159]
                %173 = vst [vmem:[%s167 + $0x10] sm:%s159] %v172
              $region45: #{net_forward.4} parent=39 // loop_footer
                %s165 = sadd.s32 1, %s161
              $region46: #{net_forward.4} parent=39 // loop_footer_branch
                %160 = sbr.rel target = $region42
              $region47: #{net_forward.4} parent=39 // loop_exit
                _
            $region40: #{net_forward.4} parent=31 // pred_fallthru
              _
          $region32: #{net_forward.4} parent=27 // pred_fallthru
            _
          %192 = vnop
        $region28: #{net_forward.4} parent=23 // pred_fallthru
          _
      $region24: #{net_forward.4} parent=5 // pred_fallthru
        _
      %p193 = scmp.le.s32.totalorder 1, %s9
      %p194 = scmp.lt.s32.totalorder %s9, 9
      %p195 = pnand %p193, %p194
      %p196 = pneg %p195
      // Predicated region
      $region63: #{net_forward.4} parent=5 // pred_check
        _
      $region64: #{net_forward.4} parent=5 // pred_check_branch
        %198 = sbr.rel (%p195) target = $region66
      $region65: #{net_forward.4} parent=5 // pred_region
        %s199 = ssub.s32 %s9, 1
        %s200 = sand.u32 %s36, 1
        %s201 = sand.u32 %s36, 1
        %s202 = smul.addr %s201, 24
        %s203 = scalar_lea.vmem [#allocation3], %s202
        // Predicated region
        $region67: #{net_forward.4} parent=65 // pred_check
          %p204 = pneg %p49
        $region68: #{net_forward.4} parent=65 // pred_check_branch
          %206 = sbr.rel (%p204) target = $region70
        $region69: #{net_forward.4} parent=65 // pred_region
          _
        $region70: #{net_forward.4} parent=65 // pred_fallthru
          _
        %s207 = sand.u32 %s36, 1
        %s208 = sand.u32 %s36, 1
        %s209 = smul.addr %s208, 24
        %s210 = scalar_lea.vmem [#allocation3], %s209
        %p211 = pneg %p49
        %p212 = pneg %p46
        %p213 = pneg %p70
        %p214 = pneg %p67
        %p215 = pneg %p91
        %p216 = pneg %p88
        %p217 = pneg %p117
        %p218 = pneg %p114
        %p219 = scmp.lt.s32.totalorder %s18, 0
        %s220 = scalar_select %p219, %s18, 0
        %s221 = smul.addr %s220, 8
        %s222 = scalar_lea.vmem %s3, %s221
        %s223 = sadd.s32 %s19, %s18
        %p224 = scmp.lt.s32.totalorder %s18, 0
        %s225 = scalar_select %p224, %s18, 0
        %s226 = smul.addr %s225, 8
        %s227 = scalar_lea.vmem %s3, %s226
        %p229 = scmp.eq.s32.totalorder %s19, 0
        // Predicated region
        $region71: #{net_forward.4} parent=65 // pred_check
          %p230 = pneg %p229
        $region72: #{net_forward.4} parent=65 // pred_check_branch
          %232 = sbr.rel (%p230) target = $region74
        $region73: #{net_forward.4} parent=65 // pred_region
          %vm233 = vcmask 261120
          %234 = vst.msk [vmem:[#allocation2] sm:$0xff] %vm233, 0.0
        $region74: #{net_forward.4} parent=65 // pred_fallthru
          _
        %v235 = vld [vmem:[#allocation2] sm:$0xff]
        %v236 = vpack.c.bf16 %v235, %v235
        %v237 = vld [vmem:[%s1] sm:$0xf]
        %v238 = vld [vmem:[%s1 + $0x4] sm:$0xf]
        %v239 = vld [vmem:[%s1 + $0x8] sm:$0xf]
        %v240 = vld [vmem:[%s1 + $0xc] sm:$0xf]
        %v241 = vld [vmem:[%s2] sm:$0x1]
        %v243 = vlaneseq
        %v244 = vshrl.u32 %v243, 7
        %v245 = vsub.s32 0, %v244
        %v246 = vrot.slane %v241, %v245
        %v252 = vunpack.c.l.b16 %v237
        %v253 = vunpack.c.l.b16 %v238
        %v254 = vunpack.c.l.b16 %v239
        %v255 = vunpack.c.l.b16 %v240
        %v256 = vpack.c.b16 %v253, %v252
        %v257 = vpack.c.b16 %v255, %v254
        %vm260 = vcmask 261120
        %v262 = vsel %vm260, %v236, 0
        %264 = vmatprep.subr.bf16.mxu0 0
        %265 = vmatpush1.bf16.msra.mxu0 0
        %266 = vmatprep.subr.bf16.mxu0 0
        %267 = vmatpush1.bf16.msra.mxu0 0
        %268 = vmatprep.subr.bf16.mxu0 0
        %269 = vmatpush1.bf16.msra.mxu0 0
        %270 = vmatprep.subr.bf16.mxu0 0
        %271 = vmatpush1.bf16.msra.mxu0 0
        %272 = vmatprep.subr.bf16.mxu0 0
        %273 = vmatpush1.bf16.msra.mxu0 0
        %274 = vmatprep.subr.bf16.mxu0 0
        %275 = vmatpush1.bf16.msra.mxu0 0
        %276 = vmatprep.subr.bf16.mxu0 0
        %277 = vmatpush1.bf16.msra.mxu0 %v257
        %278 = vmatprep.subr.bf16.mxu0 0
        %279 = vmatpush1.bf16.msra.mxu0 %v256
        %280 = vmatprep.subr.bf16.mxu0 0
        %281 = vmatpush2.bf16.msra.mxu0 0
        %282 = vmatprep.subr.bf16.mxu0 0
        %283 = vmatpush2.bf16.msra.mxu0 0
        %284 = vmatprep.subr.bf16.mxu0 0
        %285 = vmatpush2.bf16.msra.mxu0 0
        %286 = vmatprep.subr.bf16.mxu0 0
        %287 = vmatpush2.bf16.msra.mxu0 0
        %288 = vmatprep.subr.bf16.mxu0 0
        %289 = vmatpush2.bf16.msra.mxu0 0
        %290 = vmatprep.subr.bf16.mxu0 0
        %291 = vmatpush2.bf16.msra.mxu0 0
        %292 = vmatprep.subr.bf16.mxu0 0
        %293 = vmatpush2.bf16.msra.mxu0 0
        %294 = vmatprep.subr.bf16.mxu0 0
        %295 = vmatpush2.bf16.msra.mxu0 0
        %296 = vmatprep.mubr.bf16.mxu0 0
        %297 = vmatmul.mubr.bf16.gmra.mxu0 %v262
        %v298 = vpop.f32.mrf.mxu0
        %v299 = vadd.f32 %v246, %v298
        %v300 = vpop.f32.mrf.mxu0
        %v301 = vpop.f32.mrf.mxu0
        %v302 = vpop.f32.mrf.mxu0
        %303 = vdwg.mxu0
        %s304 = scalar_lea.vmem %s1, 16
        %v305 = vld [vmem:[%s304] sm:$0xf]
        %v306 = vld [vmem:[%s304 + $0x4] sm:$0xf]
        %v307 = vld [vmem:[%s304 + $0x8] sm:$0xf]
        %v308 = vld [vmem:[%s304 + $0xc] sm:$0xf]
        %s309 = scalar_lea.vmem %s2, 1
        %v310 = vld [vmem:[%s309] sm:$0x1]
        %v312 = vlaneseq
        %v313 = vshrl.u32 %v312, 7
        %v314 = vsub.s32 0, %v313
        %v315 = vrot.slane %v310, %v314
        %v321 = vunpack.c.l.b16 %v305
        %v322 = vunpack.c.l.b16 %v306
        %v323 = vunpack.c.l.b16 %v307
        %v324 = vunpack.c.l.b16 %v308
        %v325 = vpack.c.b16 %v322, %v321
        %v326 = vpack.c.b16 %v324, %v323
        %329 = vmatprep.subr.bf16.mxu0 0
        %330 = vmatpush1.bf16.msra.mxu0 0
        %331 = vmatprep.subr.bf16.mxu0 0
        %332 = vmatpush1.bf16.msra.mxu0 0
        %333 = vmatprep.subr.bf16.mxu0 0
        %334 = vmatpush1.bf16.msra.mxu0 0
        %335 = vmatprep.subr.bf16.mxu0 0
        %336 = vmatpush1.bf16.msra.mxu0 0
        %337 = vmatprep.subr.bf16.mxu0 0
        %338 = vmatpush1.bf16.msra.mxu0 0
        %339 = vmatprep.subr.bf16.mxu0 0
        %340 = vmatpush1.bf16.msra.mxu0 0
        %341 = vmatprep.subr.bf16.mxu0 0
        %342 = vmatpush1.bf16.msra.mxu0 %v326
        %343 = vmatprep.subr.bf16.mxu0 0
        %344 = vmatpush1.bf16.msra.mxu0 %v325
        %345 = vmatprep.subr.bf16.mxu0 0
        %346 = vmatpush2.bf16.msra.mxu0 0
        %347 = vmatprep.subr.bf16.mxu0 0
        %348 = vmatpush2.bf16.msra.mxu0 0
        %349 = vmatprep.subr.bf16.mxu0 0
        %350 = vmatpush2.bf16.msra.mxu0 0
        %351 = vmatprep.subr.bf16.mxu0 0
        %352 = vmatpush2.bf16.msra.mxu0 0
        %353 = vmatprep.subr.bf16.mxu0 0
        %354 = vmatpush2.bf16.msra.mxu0 0
        %355 = vmatprep.subr.bf16.mxu0 0
        %356 = vmatpush2.bf16.msra.mxu0 0
        %357 = vmatprep.subr.bf16.mxu0 0
        %358 = vmatpush2.bf16.msra.mxu0 0
        %359 = vmatprep.subr.bf16.mxu0 0
        %360 = vmatpush2.bf16.msra.mxu0 0
        %361 = vmatprep.mubr.bf16.mxu0 0
        %362 = vmatmul.mubr.bf16.gmra.mxu0 %v262
        %v363 = vpop.f32.mrf.mxu0
        %v364 = vadd.f32 %v315, %v363
        %v365 = vpop.f32.mrf.mxu0
        %v366 = vpop.f32.mrf.mxu0
        %v367 = vpop.f32.mrf.mxu0
        %368 = vdwg.mxu0
        %s369 = scalar_lea.vmem %s1, 32
        %v370 = vld [vmem:[%s369] sm:$0xf]
        %v371 = vld [vmem:[%s369 + $0x4] sm:$0xf]
        %v372 = vld [vmem:[%s369 + $0x8] sm:$0xf]
        %v373 = vld [vmem:[%s369 + $0xc] sm:$0xf]
        %s374 = scalar_lea.vmem %s2, 2
        %v375 = vld [vmem:[%s374] sm:$0x1]
        %v377 = vlaneseq
        %v378 = vshrl.u32 %v377, 7
        %v379 = vsub.s32 0, %v378
        %v380 = vrot.slane %v375, %v379
        %v386 = vunpack.c.l.b16 %v370
        %v387 = vunpack.c.l.b16 %v371
        %v388 = vunpack.c.l.b16 %v372
        %v389 = vunpack.c.l.b16 %v373
        %v390 = vpack.c.b16 %v387, %v386
        %v391 = vpack.c.b16 %v389, %v388
        %394 = vmatprep.subr.bf16.mxu0 0
        %395 = vmatpush1.bf16.msra.mxu0 0
        %396 = vmatprep.subr.bf16.mxu0 0
        %397 = vmatpush1.bf16.msra.mxu0 0
        %398 = vmatprep.subr.bf16.mxu0 0
        %399 = vmatpush1.bf16.msra.mxu0 0
        %400 = vmatprep.subr.bf16.mxu0 0
        %401 = vmatpush1.bf16.msra.mxu0 0
        %402 = vmatprep.subr.bf16.mxu0 0
        %403 = vmatpush1.bf16.msra.mxu0 0
        %404 = vmatprep.subr.bf16.mxu0 0
        %405 = vmatpush1.bf16.msra.mxu0 0
        %406 = vmatprep.subr.bf16.mxu0 0
        %407 = vmatpush1.bf16.msra.mxu0 %v391
        %408 = vmatprep.subr.bf16.mxu0 0
        %409 = vmatpush1.bf16.msra.mxu0 %v390
        %410 = vmatprep.subr.bf16.mxu0 0
        %411 = vmatpush2.bf16.msra.mxu0 0
        %412 = vmatprep.subr.bf16.mxu0 0
        %413 = vmatpush2.bf16.msra.mxu0 0
        %414 = vmatprep.subr.bf16.mxu0 0
        %415 = vmatpush2.bf16.msra.mxu0 0
        %416 = vmatprep.subr.bf16.mxu0 0
        %417 = vmatpush2.bf16.msra.mxu0 0
        %418 = vmatprep.subr.bf16.mxu0 0
        %419 = vmatpush2.bf16.msra.mxu0 0
        %420 = vmatprep.subr.bf16.mxu0 0
        %421 = vmatpush2.bf16.msra.mxu0 0
        %422 = vmatprep.subr.bf16.mxu0 0
        %423 = vmatpush2.bf16.msra.mxu0 0
        %424 = vmatprep.subr.bf16.mxu0 0
        %425 = vmatpush2.bf16.msra.mxu0 0
        %426 = vmatprep.mubr.bf16.mxu0 0
        %427 = vmatmul.mubr.bf16.gmra.mxu0 %v262
        %v428 = vpop.f32.mrf.mxu0
        %v429 = vadd.f32 %v380, %v428
        %v430 = vpop.f32.mrf.mxu0
        %v431 = vpop.f32.mrf.mxu0
        %v432 = vpop.f32.mrf.mxu0
        %433 = vdwg.mxu0
        %v434 = vld [vmem:[%s203] sm:$0xff]
        %v435 = vadd.f32 %v434, %v299
        %v436 = vxor.u32 %v435, 2147483648
        %v437 = vmul.f32 %v436, 1.442695
        %v438 = vpow.pop %v437
        %v439 = vadd.f32 %v438, 1.0
        %v440 = vrcp.pop %v439
        %v441 = vmul.f32 1.0, %v440
        %s442 = scalar_lea.vmem %s203, 8 [#allocation3]
        %v443 = vld [vmem:[%s442] sm:$0xff]
        %v444 = vadd.f32 %v443, %v364
        %v445 = vxor.u32 %v444, 2147483648
        %v446 = vmul.f32 %v445, 1.442695
        %v447 = vpow.pop %v446
        %v448 = vadd.f32 %v447, 1.0
        %v449 = vrcp.pop %v448
        %v450 = vmul.f32 1.0, %v449
        %s451 = scalar_lea.vmem %s203, 16 [#allocation3]
        %v452 = vld [vmem:[%s451] sm:$0xff]
        %v453 = vmul.f32 %v441, %v429
        %v454 = vadd.f32 %v452, %v453
        %v455 = vtanh.pop %v454
        %v456 = vsub.f32 1.0, %v450
        %v457 = vmul.f32 %v456, %v455
        %v458 = vmul.f32 %v450, %v235
        %v459 = vadd.f32 %v457, %v458
        %460 = vst.msk [vmem:[#allocation2] sm:$0xff] %vm260, %v459
        %p461 = scmp.eq.s32.totalorder %s19, 7
        // Predicated region
        $region75: #{net_forward.4} parent=65 // pred_check
          %p462 = pneg %p461
        $region76: #{net_forward.4} parent=65 // pred_check_branch
          %464 = sbr.rel (%p462) target = $region78
        $region77: #{net_forward.4} parent=65 // pred_region
          %465 = vst.msk [vmem:[%s227] sm:$0xff] %vm260, %v459
        $region78: #{net_forward.4} parent=65 // pred_fallthru
          _
        %p466 = scmp.lt.s32.totalorder %s18, 0
        %s467 = scalar_select %p466, %s18, 0
        %s468 = smul.addr %s467, 8
        %s469 = scalar_lea.vmem %s3, %s468
        // Predicated region
        $region79: #{net_forward.4} parent=65 // pred_check
          %p470 = pneg %p114
        $region80: #{net_forward.4} parent=65 // pred_check_branch
          %472 = sbr.rel (%p470) target = $region82
        $region81: #{net_forward.4} parent=65 // pred_region
          _
        $region82: #{net_forward.4} parent=65 // pred_fallthru
          _
        // Predicated region
        $region83: #{net_forward.4} parent=65 // pred_check
          %p473 = pneg %p114
        $region84: #{net_forward.4} parent=65 // pred_check_branch
          %475 = sbr.rel (%p473) target = $region86
        $region85: #{net_forward.4} parent=65 // pred_region
          %p476 = scmp.lt.s32.totalorder %s18, 0
          %s477 = scalar_select %p476, %s18, 0
          %s478 = smul.addr %s477, 8
          %s479 = scalar_lea.vmem %s3, %s478
        $region86: #{net_forward.4} parent=65 // pred_fallthru
          _
      $region66: #{net_forward.4} parent=5 // pred_fallthru
        _
      %p480 = scmp.le.s32.totalorder 2, %s9
      // Predicated region
      $region87: #{net_forward.4} parent=5 // pred_check
        %p481 = pneg %p480
      $region88: #{net_forward.4} parent=5 // pred_check_branch
        %483 = sbr.rel (%p481) target = $region90
      $region89: #{net_forward.4} parent=5 // pred_region
        %s484 = ssub.s32 %s9, 2
      $region90: #{net_forward.4} parent=5 // pred_fallthru
        _
    $region6: #{net_forward.4} parent=1 // loop_footer
      %s13 = sadd.s32 1, %s9
    $region7: #{net_forward.4} parent=1 // loop_footer_branch
      %8 = sbr.rel target = $region3
    $region8: #{net_forward.4} parent=1 // loop_exit
      _

// kernel: net_forward.3
$region0: #{net_forward.3}
  #allocation0 [shape = 'u32[]', space=smem, size = 0x4, offset = 0x4, fixed_abs, tag = 'smem constant byte address 0x4 - core index']
  #allocation1 [shape = 'u32[144,128]{1,0:T(1,128)}', space=vmem, size = 0x12000, scoped, tag = 'internal scratch']
  %s0 = inlined_call_operand.vmem [shape: bf16[64,32], index: 0, kind: input, shape index: {}]
  %s1 = inlined_call_operand.vmem [shape: bf16[3,32,32], index: 1, kind: input, shape index: {}]
  %s2 = inlined_call_operand.vmem [shape: f32[3,1,32], index: 2, kind: input, shape index: {}]
  %s3 = inlined_call_operand.vmem [shape: f32[3,64,32], index: 3, kind: output, shape index: {}]
  %s4 = sld [smem:[#allocation0]]
  $region22: #{net_forward.3} parent=0
    _
  %s6 = ssub.s32 1, %s4
  %s7 = scalar_select 0, %s6, %s4
  // Predicated region
  $region2: #{net_forward.3} parent=0 // pred_check
    _
  $region3: #{net_forward.3} parent=0 // pred_check_branch
    %9 = sbr.rel (0) target = $region5
  $region4: #{net_forward.3} parent=0 // pred_region
    _
  $region5: #{net_forward.3} parent=0 // pred_fallthru
    _
  // Predicated region
  $region6: #{net_forward.3} parent=0 // pred_check
    _
  $region7: #{net_forward.3} parent=0 // pred_check_branch
    %11 = sbr.rel (0) target = $region9
  $region8: #{net_forward.3} parent=0 // pred_region
    _
  $region9: #{net_forward.3} parent=0 // pred_fallthru
    _
  // Predicated region
  $region10: #{net_forward.3} parent=0 // pred_check
    _
  $region11: #{net_forward.3} parent=0 // pred_check_branch
    %13 = sbr.rel (0) target = $region13
  $region12: #{net_forward.3} parent=0 // pred_region
    _
  $region13: #{net_forward.3} parent=0 // pred_fallthru
    _
  %v15 = vld [vmem:[%s0] sm:$0xf]
  %v16 = vld [vmem:[%s0 + $0x4] sm:$0xf]
  %v17 = vld [vmem:[%s0 + $0x8] sm:$0xf]
  %v18 = vld [vmem:[%s0 + $0xc] sm:$0xf]
  %v19 = vld [vmem:[%s0 + $0x10] sm:$0xf]
  %v20 = vld [vmem:[%s0 + $0x14] sm:$0xf]
  %v21 = vld [vmem:[%s0 + $0x18] sm:$0xf]
  %v22 = vld [vmem:[%s0 + $0x1c] sm:$0xf]
  %v23 = vld [vmem:[%s1] sm:$0xf]
  %v24 = vld [vmem:[%s1 + $0x4] sm:$0xf]
  %v25 = vld [vmem:[%s1 + $0x8] sm:$0xf]
  %v26 = vld [vmem:[%s1 + $0xc] sm:$0xf]
  %v27 = vld [vmem:[%s2] sm:$0x1]
  %v29 = vlaneseq
  %v30 = vshrl.u32 %v29, 7
  %v31 = vsub.s32 0, %v30
  %v32 = vrot.slane %v27, %v31
  %v42 = vunpack.c.l.b16 %v15
  %v43 = vunpack.c.l.b16 %v16
  %v44 = vunpack.c.l.b16 %v17
  %v45 = vunpack.c.l.b16 %v18
  %v46 = vunpack.c.l.b16 %v19
  %v47 = vunpack.c.l.b16 %v20
  %v48 = vunpack.c.l.b16 %v21
  %v49 = vunpack.c.l.b16 %v22
  %v50 = vpack.c.b16 %v43, %v42
  %v51 = vpack.c.b16 %v45, %v44
  %v52 = vpack.c.b16 %v47, %v46
  %v53 = vpack.c.b16 %v49, %v48
  %v58 = vunpack.c.l.b16 %v23
  %v59 = vunpack.c.l.b16 %v24
  %v60 = vunpack.c.l.b16 %v25
  %v61 = vunpack.c.l.b16 %v26
  %v62 = vpack.c.b16 %v59, %v58
  %v63 = vpack.c.b16 %v61, %v60
  %vm66 = vcmask 261120
  %v68 = vsel %vm66, %v50, 0
  %v71 = vsel %vm66, %v51, 0
  %v74 = vsel %vm66, %v52, 0
  %v77 = vsel %vm66, %v53, 0
  %79 = vmatprep.subr.bf16.mxu0 0
  %80 = vmatpush1.bf16.msra.mxu0 0
  %81 = vmatprep.subr.bf16.mxu0 0
  %82 = vmatpush1.bf16.msra.mxu0 0
  %83 = vmatprep.subr.bf16.mxu0 0
  %84 = vmatpush1.bf16.msra.mxu0 0
  %85 = vmatprep.subr.bf16.mxu0 0
  %86 = vmatpush1.bf16.msra.mxu0 0
  %87 = vmatprep.subr.bf16.mxu0 0
  %88 = vmatpush1.bf16.msra.mxu0 0
  %89 = vmatprep.subr.bf16.mxu0 0
  %90 = vmatpush1.bf16.msra.mxu0 0
  %91 = vmatprep.subr.bf16.mxu0 0
  %92 = vmatpush1.bf16.msra.mxu0 %v63
  %93 = vmatprep.subr.bf16.mxu0 0
  %94 = vmatpush1.bf16.msra.mxu0 %v62
  %95 = vmatprep.subr.bf16.mxu0 0
  %96 = vmatpush2.bf16.msra.mxu0 0
  %97 = vmatprep.subr.bf16.mxu0 0
  %98 = vmatpush2.bf16.msra.mxu0 0
  %99 = vmatprep.subr.bf16.mxu0 0
  %100 = vmatpush2.bf16.msra.mxu0 0
  %101 = vmatprep.subr.bf16.mxu0 0
  %102 = vmatpush2.bf16.msra.mxu0 0
  %103 = vmatprep.subr.bf16.mxu0 0
  %104 = vmatpush2.bf16.msra.mxu0 0
  %105 = vmatprep.subr.bf16.mxu0 0
  %106 = vmatpush2.bf16.msra.mxu0 0
  %107 = vmatprep.subr.bf16.mxu0 0
  %108 = vmatpush2.bf16.msra.mxu0 0
  %109 = vmatprep.subr.bf16.mxu0 0
  %110 = vmatpush2.bf16.msra.mxu0 0
  %111 = vmatprep.mubr.bf16.mxu0 0
  %112 = vmatmul.mubr.bf16.gmra.mxu0 %v68
  %v113 = vpop.f32.mrf.mxu0
  %v114 = vadd.f32 %v32, %v113
  %v115 = vpop.f32.mrf.mxu0
  %v116 = vpop.f32.mrf.mxu0
  %v117 = vadd.f32 %v32, %v116
  %v118 = vpop.f32.mrf.mxu0
  %119 = vmatprep.mubr.bf16.mxu0 0
  %120 = vmatmul.mubr.bf16.gmra.mxu0 %v71
  %v121 = vpop.f32.mrf.mxu0
  %v122 = vadd.f32 %v32, %v121
  %v123 = vpop.f32.mrf.mxu0
  %v124 = vpop.f32.mrf.mxu0
  %v125 = vadd.f32 %v32, %v124
  %v126 = vpop.f32.mrf.mxu0
  %127 = vmatprep.mubr.bf16.mxu0 0
  %128 = vmatmul.mubr.bf16.gmra.mxu0 %v74
  %v129 = vpop.f32.mrf.mxu0
  %v130 = vadd.f32 %v32, %v129
  %v131 = vpop.f32.mrf.mxu0
  %v132 = vpop.f32.mrf.mxu0
  %v133 = vadd.f32 %v32, %v132
  %v134 = vpop.f32.mrf.mxu0
  %135 = vmatprep.mubr.bf16.mxu0 0
  %136 = vmatmul.mubr.bf16.gmra.mxu0 %v77
  %v137 = vpop.f32.mrf.mxu0
  %v138 = vadd.f32 %v32, %v137
  %v139 = vpop.f32.mrf.mxu0
  %v140 = vpop.f32.mrf.mxu0
  %v141 = vadd.f32 %v32, %v140
  %v142 = vpop.f32.mrf.mxu0
  %143 = vdwg.mxu0
  %144 = vst.msk [vmem:[%s3] sm:$0xff] %vm66, %v114
  %145 = vst.msk [vmem:[%s3 + $0x8] sm:$0xff] %vm66, %v117
  %146 = vst.msk [vmem:[%s3 + $0x10] sm:$0xff] %vm66, %v122
  %147 = vst.msk [vmem:[%s3 + $0x18] sm:$0xff] %vm66, %v125
  %148 = vst.msk [vmem:[%s3 + $0x20] sm:$0xff] %vm66, %v130
  %149 = vst.msk [vmem:[%s3 + $0x28] sm:$0xff] %vm66, %v133
  %150 = vst.msk [vmem:[%s3 + $0x30] sm:$0xff] %vm66, %v138
  %151 = vst.msk [vmem:[%s3 + $0x38] sm:$0xff] %vm66, %v141
  %s152 = scalar_lea.vmem %s1, 16
  %v153 = vld [vmem:[%s152] sm:$0xf]
  %v154 = vld [vmem:[%s152 + $0x4] sm:$0xf]
  %v155 = vld [vmem:[%s152 + $0x8] sm:$0xf]
  %v156 = vld [vmem:[%s152 + $0xc] sm:$0xf]
  %s157 = scalar_lea.vmem %s2, 1
  %v158 = vld [vmem:[%s157] sm:$0x1]
  %v160 = vlaneseq
  %v161 = vshrl.u32 %v160, 7
  %v162 = vsub.s32 0, %v161
  %v163 = vrot.slane %v158, %v162
  %v169 = vunpack.c.l.b16 %v153
  %v170 = vunpack.c.l.b16 %v154
  %v171 = vunpack.c.l.b16 %v155
  %v172 = vunpack.c.l.b16 %v156
  %v173 = vpack.c.b16 %v170, %v169
  %v174 = vpack.c.b16 %v172, %v171
  %177 = vmatprep.subr.bf16.mxu0 0
  %178 = vmatpush1.bf16.msra.mxu0 0
  %179 = vmatprep.subr.bf16.mxu0 0
  %180 = vmatpush1.bf16.msra.mxu0 0
  %181 = vmatprep.subr.bf16.mxu0 0
  %182 = vmatpush1.bf16.msra.mxu0 0
  %183 = vmatprep.subr.bf16.mxu0 0
  %184 = vmatpush1.bf16.msra.mxu0 0
  %185 = vmatprep.subr.bf16.mxu0 0
  %186 = vmatpush1.bf16.msra.mxu0 0
  %187 = vmatprep.subr.bf16.mxu0 0
  %188 = vmatpush1.bf16.msra.mxu0 0
  %189 = vmatprep.subr.bf16.mxu0 0
  %190 = vmatpush1.bf16.msra.mxu0 %v174
  %191 = vmatprep.subr.bf16.mxu0 0
  %192 = vmatpush1.bf16.msra.mxu0 %v173
  %193 = vmatprep.subr.bf16.mxu0 0
  %194 = vmatpush2.bf16.msra.mxu0 0
  %195 = vmatprep.subr.bf16.mxu0 0
  %196 = vmatpush2.bf16.msra.mxu0 0
  %197 = vmatprep.subr.bf16.mxu0 0
  %198 = vmatpush2.bf16.msra.mxu0 0
  %199 = vmatprep.subr.bf16.mxu0 0
  %200 = vmatpush2.bf16.msra.mxu0 0
  %201 = vmatprep.subr.bf16.mxu0 0
  %202 = vmatpush2.bf16.msra.mxu0 0
  %203 = vmatprep.subr.bf16.mxu0 0
  %204 = vmatpush2.bf16.msra.mxu0 0
  %205 = vmatprep.subr.bf16.mxu0 0
  %206 = vmatpush2.bf16.msra.mxu0 0
  %207 = vmatprep.subr.bf16.mxu0 0
  %208 = vmatpush2.bf16.msra.mxu0 0
  %209 = vmatprep.mubr.bf16.mxu0 0
  %210 = vmatmul.mubr.bf16.gmra.mxu0 %v68
  %v211 = vpop.f32.mrf.mxu0
  %v212 = vadd.f32 %v163, %v211
  %v213 = vpop.f32.mrf.mxu0
  %v214 = vpop.f32.mrf.mxu0
  %v215 = vadd.f32 %v163, %v214
  %v216 = vpop.f32.mrf.mxu0
  %217 = vmatprep.mubr.bf16.mxu0 0
  %218 = vmatmul.mubr.bf16.gmra.mxu0 %v71
  %v219 = vpop.f32.mrf.mxu0
  %v220 = vadd.f32 %v163, %v219
  %v221 = vpop.f32.mrf.mxu0
  %v222 = vpop.f32.mrf.mxu0
  %v223 = vadd.f32 %v163, %v222
  %v224 = vpop.f32.mrf.mxu0
  %225 = vmatprep.mubr.bf16.mxu0 0
  %226 = vmatmul.mubr.bf16.gmra.mxu0 %v74
  %v227 = vpop.f32.mrf.mxu0
  %v228 = vadd.f32 %v163, %v227
  %v229 = vpop.f32.mrf.mxu0
  %v230 = vpop.f32.mrf.mxu0
  %v231 = vadd.f32 %v163, %v230
  %v232 = vpop.f32.mrf.mxu0
  %233 = vmatprep.mubr.bf16.mxu0 0
  %234 = vmatmul.mubr.bf16.gmra.mxu0 %v77
  %v235 = vpop.f32.mrf.mxu0
  %v236 = vadd.f32 %v163, %v235
  %v237 = vpop.f32.mrf.mxu0
  %v238 = vpop.f32.mrf.mxu0
  %v239 = vadd.f32 %v163, %v238
  %v240 = vpop.f32.mrf.mxu0
  %241 = vdwg.mxu0
  %s242 = scalar_lea.vmem %s3, 64
  %243 = vst.msk [vmem:[%s242] sm:$0xff] %vm66, %v212
  %244 = vst.msk [vmem:[%s242 + $0x8] sm:$0xff] %vm66, %v215
  %245 = vst.msk [vmem:[%s242 + $0x10] sm:$0xff] %vm66, %v220
  %246 = vst.msk [vmem:[%s242 + $0x18] sm:$0xff] %vm66, %v223
  %247 = vst.msk [vmem:[%s242 + $0x20] sm:$0xff] %vm66, %v228
  %248 = vst.msk [vmem:[%s242 + $0x28] sm:$0xff] %vm66, %v231
  %249 = vst.msk [vmem:[%s242 + $0x30] sm:$0xff] %vm66, %v236
  %250 = vst.msk [vmem:[%s242 + $0x38] sm:$0xff] %vm66, %v239
  %s251 = scalar_lea.vmem %s1, 32
  %v252 = vld [vmem:[%s251] sm:$0xf]
  %v253 = vld [vmem:[%s251 + $0x4] sm:$0xf]
  %v254 = vld [vmem:[%s251 + $0x8] sm:$0xf]
  %v255 = vld [vmem:[%s251 + $0xc] sm:$0xf]
  %s256 = scalar_lea.vmem %s2, 2
  %v257 = vld [vmem:[%s256] sm:$0x1]
  %v259 = vlaneseq
  %v260 = vshrl.u32 %v259, 7
  %v261 = vsub.s32 0, %v260
  %v262 = vrot.slane %v257, %v261
  %v268 = vunpack.c.l.b16 %v252
  %v269 = vunpack.c.l.b16 %v253
  %v270 = vunpack.c.l.b16 %v254
  %v271 = vunpack.c.l.b16 %v255
  %v272 = vpack.c.b16 %v269, %v268
  %v273 = vpack.c.b16 %v271, %v270
  %276 = vmatprep.subr.bf16.mxu0 0
  %277 = vmatpush1.bf16.msra.mxu0 0
  %278 = vmatprep.subr.bf16.mxu0 0
  %279 = vmatpush1.bf16.msra.mxu0 0
  %280 = vmatprep.subr.bf16.mxu0 0
  %281 = vmatpush1.bf16.msra.mxu0 0
  %282 = vmatprep.subr.bf16.mxu0 0
  %283 = vmatpush1.bf16.msra.mxu0 0
  %284 = vmatprep.subr.bf16.mxu0 0
  %285 = vmatpush1.bf16.msra.mxu0 0
  %286 = vmatprep.subr.bf16.mxu0 0
  %287 = vmatpush1.bf16.msra.mxu0 0
  %288 = vmatprep.subr.bf16.mxu0 0
  %289 = vmatpush1.bf16.msra.mxu0 %v273
  %290 = vmatprep.subr.bf16.mxu0 0
  %291 = vmatpush1.bf16.msra.mxu0 %v272
  %292 = vmatprep.subr.bf16.mxu0 0
  %293 = vmatpush2.bf16.msra.mxu0 0
  %294 = vmatprep.subr.bf16.mxu0 0
  %295 = vmatpush2.bf16.msra.mxu0 0
  %296 = vmatprep.subr.bf16.mxu0 0
  %297 = vmatpush2.bf16.msra.mxu0 0
  %298 = vmatprep.subr.bf16.mxu0 0
  %299 = vmatpush2.bf16.msra.mxu0 0
  %300 = vmatprep.subr.bf16.mxu0 0
  %301 = vmatpush2.bf16.msra.mxu0 0
  %302 = vmatprep.subr.bf16.mxu0 0
  %303 = vmatpush2.bf16.msra.mxu0 0
  %304 = vmatprep.subr.bf16.mxu0 0
  %305 = vmatpush2.bf16.msra.mxu0 0
  %306 = vmatprep.subr.bf16.mxu0 0
  %307 = vmatpush2.bf16.msra.mxu0 0
  %308 = vmatprep.mubr.bf16.mxu0 0
  %309 = vmatmul.mubr.bf16.gmra.mxu0 %v68
  %v310 = vpop.f32.mrf.mxu0
  %v311 = vadd.f32 %v262, %v310
  %v312 = vpop.f32.mrf.mxu0
  %v313 = vpop.f32.mrf.mxu0
  %v314 = vadd.f32 %v262, %v313
  %v315 = vpop.f32.mrf.mxu0
  %316 = vmatprep.mubr.bf16.mxu0 0
  %317 = vmatmul.mubr.bf16.gmra.mxu0 %v71
  %v318 = vpop.f32.mrf.mxu0
  %v319 = vadd.f32 %v262, %v318
  %v320 = vpop.f32.mrf.mxu0
  %v321 = vpop.f32.mrf.mxu0
  %v322 = vadd.f32 %v262, %v321
  %v323 = vpop.f32.mrf.mxu0
  %324 = vmatprep.mubr.bf16.mxu0 0
  %325 = vmatmul.mubr.bf16.gmra.mxu0 %v74
  %v326 = vpop.f32.mrf.mxu0
  %v327 = vadd.f32 %v262, %v326
  %v328 = vpop.f32.mrf.mxu0
  %v329 = vpop.f32.mrf.mxu0
  %v330 = vadd.f32 %v262, %v329
  %v331 = vpop.f32.mrf.mxu0
  %332 = vmatprep.mubr.bf16.mxu0 0
  %333 = vmatmul.mubr.bf16.gmra.mxu0 %v77
  %v334 = vpop.f32.mrf.mxu0
  %v335 = vadd.f32 %v262, %v334
  %v336 = vpop.f32.mrf.mxu0
  %v337 = vpop.f32.mrf.mxu0
  %v338 = vadd.f32 %v262, %v337
  %v339 = vpop.f32.mrf.mxu0
  %340 = vdwg.mxu0
  %s341 = scalar_lea.vmem %s3, 128
  %342 = vst.msk [vmem:[%s341] sm:$0xff] %vm66, %v311
  %343 = vst.msk [vmem:[%s341 + $0x8] sm:$0xff] %vm66, %v314
  %344 = vst.msk [vmem:[%s341 + $0x10] sm:$0xff] %vm66, %v319
  %345 = vst.msk [vmem:[%s341 + $0x18] sm:$0xff] %vm66, %v322
  %346 = vst.msk [vmem:[%s341 + $0x20] sm:$0xff] %vm66, %v327
  %347 = vst.msk [vmem:[%s341 + $0x28] sm:$0xff] %vm66, %v330
  %348 = vst.msk [vmem:[%s341 + $0x30] sm:$0xff] %vm66, %v335
  %349 = vst.msk [vmem:[%s341 + $0x38] sm:$0xff] %vm66, %v338
  // Predicated region
  $region14: #{net_forward.3} parent=0 // pred_check
    _
  $region15: #{net_forward.3} parent=0 // pred_check_branch
    %351 = sbr.rel (0) target = $region17
  $region16: #{net_forward.3} parent=0 // pred_region
    _
  $region17: #{net_forward.3} parent=0 // pred_fallthru
    _
  // Predicated region
  $region18: #{net_forward.3} parent=0 // pred_check
    _
  $region19: #{net_forward.3} parent=0 // pred_check_branch
    %353 = sbr.rel (0) target = $region21
  $region20: #{net_forward.3} parent=0 // pred_region
    _
  $region21: #{net_forward.3} parent=0 // pred_fallthru
    _

// kernel: net_forward.5
$region0: #{net_forward.5}
  #allocation0 [shape = 'u32[]', space=smem, size = 0x4, offset = 0x4, fixed_abs, tag = 'smem constant byte address 0x4 - core index']
  #allocation1 [shape = 'u32[144,128]{1,0:T(1,128)}', space=vmem, size = 0x12000, scoped, tag = 'internal scratch']
  %s0 = inlined_call_operand.vmem [shape: f32[8,176], index: 0, kind: input, shape index: {}]
  %s1 = inlined_call_operand.vmem [shape: bf16[176,64], index: 1, kind: input, shape index: {}]
  %s2 = inlined_call_operand.vmem [shape: f32[1,64], index: 2, kind: input, shape index: {}]
  %s3 = inlined_call_operand.vmem [shape: bf16[64,32], index: 3, kind: input, shape index: {}]
  %s4 = inlined_call_operand.vmem [shape: f32[1,32], index: 4, kind: input, shape index: {}]
  %s5 = inlined_call_operand.vmem [shape: bf16[32,128], index: 5, kind: input, shape index: {}]
  %s6 = inlined_call_operand.vmem [shape: f32[1,128], index: 6, kind: input, shape index: {}]
  %s7 = inlined_call_operand.vmem [shape: f32[8,128], index: 7, kind: output, shape index: {}]
  %s8 = sld [smem:[#allocation0]]
  $region38: #{net_forward.5} parent=0
    _
  %s10 = ssub.s32 1, %s8
  %s11 = scalar_select 0, %s10, %s8
  // Predicated region
  $region2: #{net_forward.5} parent=0 // pred_check
    _
  $region3: #{net_forward.5} parent=0 // pred_check_branch
    %13 = sbr.rel (0) target = $region5
  $region4: #{net_forward.5} parent=0 // pred_region
    _
  $region5: #{net_forward.5} parent=0 // pred_fallthru
    _
  // Predicated region
  $region6: #{net_forward.5} parent=0 // pred_check
    _
  $region7: #{net_forward.5} parent=0 // pred_check_branch
    %15 = sbr.rel (0) target = $region9
  $region8: #{net_forward.5} parent=0 // pred_region
    _
  $region9: #{net_forward.5} parent=0 // pred_fallthru
    _
  // Predicated region
  $region10: #{net_forward.5} parent=0 // pred_check
    _
  $region11: #{net_forward.5} parent=0 // pred_check_branch
    %17 = sbr.rel (0) target = $region13
  $region12: #{net_forward.5} parent=0 // pred_region
    _
  $region13: #{net_forward.5} parent=0 // pred_fallthru
    _
  // Predicated region
  $region14: #{net_forward.5} parent=0 // pred_check
    _
  $region15: #{net_forward.5} parent=0 // pred_check_branch
    %19 = sbr.rel (0) target = $region17
  $region16: #{net_forward.5} parent=0 // pred_region
    _
  $region17: #{net_forward.5} parent=0 // pred_fallthru
    _
  // Predicated region
  $region18: #{net_forward.5} parent=0 // pred_check
    _
  $region19: #{net_forward.5} parent=0 // pred_check_branch
    %21 = sbr.rel (0) target = $region21
  $region20: #{net_forward.5} parent=0 // pred_region
    _
  $region21: #{net_forward.5} parent=0 // pred_fallthru
    _
  // Predicated region
  $region22: #{net_forward.5} parent=0 // pred_check
    _
  $region23: #{net_forward.5} parent=0 // pred_check_branch
    %23 = sbr.rel (0) target = $region25
  $region24: #{net_forward.5} parent=0 // pred_region
    _
  $region25: #{net_forward.5} parent=0 // pred_fallthru
    _
  // Predicated region
  $region26: #{net_forward.5} parent=0 // pred_check
    _
  $region27: #{net_forward.5} parent=0 // pred_check_branch
    %25 = sbr.rel (0) target = $region29
  $region28: #{net_forward.5} parent=0 // pred_region
    _
  $region29: #{net_forward.5} parent=0 // pred_fallthru
    _
  %v27 = vld [vmem:[%s0] sm:$0xff]
  %v28 = vld [vmem:[%s0 + $0x8] sm:$0xff]
  %v29 = vld [vmem:[%s1] sm:$0xf]
  %v30 = vld [vmem:[%s1 + $0x4] sm:$0xf]
  %v31 = vld [vmem:[%s1 + $0x8] sm:$0xf]
  %v32 = vld [vmem:[%s1 + $0xc] sm:$0xf]
  %v33 = vld [vmem:[%s1 + $0x10] sm:$0xf]
  %v34 = vld [vmem:[%s1 + $0x14] sm:$0xf]
  %v35 = vld [vmem:[%s1 + $0x18] sm:$0xf]
  %v36 = vld [vmem:[%s1 + $0x1c] sm:$0xf]
  %v37 = vld [vmem:[%s1 + $0x20] sm:$0xf]
  %v38 = vld [vmem:[%s1 + $0x24] sm:$0xf]
  %v39 = vld [vmem:[%s1 + $0x28] sm:$0xf]
  %v40 = vld [vmem:[%s1 + $0x2c] sm:$0xf]
  %v41 = vld [vmem:[%s1 + $0x30] sm:$0xf]
  %v42 = vld [vmem:[%s1 + $0x34] sm:$0xf]
  %v43 = vld [vmem:[%s1 + $0x38] sm:$0xf]
  %v44 = vld [vmem:[%s1 + $0x3c] sm:$0xf]
  %v45 = vld [vmem:[%s1 + $0x40] sm:$0xf]
  %v46 = vld [vmem:[%s1 + $0x44] sm:$0xf]
  %v47 = vld [vmem:[%s1 + $0x48] sm:$0xf]
  %v48 = vld [vmem:[%s1 + $0x4c] sm:$0xf]
  %v49 = vld [vmem:[%s1 + $0x50] sm:$0xf]
  %v50 = vld [vmem:[%s1 + $0x54] sm:$0xf]
  %v51 = vld [vmem:[%s2] sm:$0x1]
  %v52 = vpack.c.bf16 %v27, %v27
  %v53 = vpack.c.bf16 %v28, %v28
  %v55 = vlaneseq
  %v56 = vshrl.u32 %v55, 7
  %v57 = vsub.s32 0, %v56
  %v58 = vrot.slane %v51, %v57
  %v82 = vunpack.c.l.b16 %v29
  %v83 = vunpack.c.l.b16 %v30
  %v84 = vunpack.c.l.b16 %v31
  %v85 = vunpack.c.l.b16 %v32
  %v86 = vunpack.c.l.b16 %v33
  %v87 = vunpack.c.l.b16 %v34
  %v88 = vunpack.c.l.b16 %v35
  %v89 = vunpack.c.l.b16 %v36
  %v90 = vunpack.c.l.b16 %v37
  %v91 = vunpack.c.l.b16 %v38
  %v92 = vunpack.c.l.b16 %v39
  %v93 = vunpack.c.l.b16 %v40
  %v94 = vunpack.c.l.b16 %v41
  %v95 = vunpack.c.l.b16 %v42
  %v96 = vunpack.c.l.b16 %v43
  %v97 = vunpack.c.l.b16 %v44
  %v98 = vunpack.c.l.b16 %v45
  %v99 = vunpack.c.l.b16 %v46
  %v100 = vunpack.c.l.b16 %v47
  %v101 = vunpack.c.l.b16 %v48
  %v102 = vunpack.c.l.b16 %v49
  %v103 = vunpack.c.l.b16 %v50
  %v104 = vpack.c.b16 %v83, %v82
  %v105 = vpack.c.b16 %v85, %v84
  %v106 = vpack.c.b16 %v87, %v86
  %v107 = vpack.c.b16 %v89, %v88
  %v108 = vpack.c.b16 %v91, %v90
  %v109 = vpack.c.b16 %v93, %v92
  %v110 = vpack.c.b16 %v95, %v94
  %v111 = vpack.c.b16 %v97, %v96
  %v112 = vpack.c.b16 %v99, %v98
  %v113 = vpack.c.b16 %v101, %v100
  %v114 = vpack.c.b16 %v103, %v102
  %vm126 = vcmask 392192
  %v128 = vsel %vm126, %v53, 0
  %130 = vmatprep.subr.bf16.mxu0 0
  %131 = vmatpush1.bf16.msra.mxu0 %v111
  %132 = vmatprep.subr.bf16.mxu0 0
  %133 = vmatpush1.bf16.msra.mxu0 %v110
  %134 = vmatprep.subr.bf16.mxu0 0
  %135 = vmatpush1.bf16.msra.mxu0 %v109
  %136 = vmatprep.subr.bf16.mxu0 0
  %137 = vmatpush1.bf16.msra.mxu0 %v108
  %138 = vmatprep.subr.bf16.mxu0 0
  %139 = vmatpush1.bf16.msra.mxu0 %v107
  %140 = vmatprep.subr.bf16.mxu0 0
  %141 = vmatpush1.bf16.msra.mxu0 %v106
  %142 = vmatprep.subr.bf16.mxu0 0
  %143 = vmatpush1.bf16.msra.mxu0 %v105
  %144 = vmatprep.subr.bf16.mxu0 0
  %145 = vmatpush1.bf16.msra.mxu0 %v104
  %146 = vmatprep.subr.bf16.mxu0 0
  %147 = vmatpush2.bf16.msra.mxu0 0
  %148 = vmatprep.subr.bf16.mxu0 0
  %149 = vmatpush2.bf16.msra.mxu0 0
  %150 = vmatprep.subr.bf16.mxu0 0
  %151 = vmatpush2.bf16.msra.mxu0 0
  %152 = vmatprep.subr.bf16.mxu0 0
  %153 = vmatpush2.bf16.msra.mxu0 0
  %154 = vmatprep.subr.bf16.mxu0 0
  %155 = vmatpush2.bf16.msra.mxu0 0
  %156 = vmatprep.subr.bf16.mxu0 0
  %157 = vmatpush2.bf16.msra.mxu0 %v114
  %158 = vmatprep.subr.bf16.mxu0 0
  %159 = vmatpush2.bf16.msra.mxu0 %v113
  %160 = vmatprep.subr.bf16.mxu0 0
  %161 = vmatpush2.bf16.msra.mxu0 %v112
  %162 = vmatprep.mubr.bf16.mxu0 %v128
  %163 = vmatmul.mubr.bf16.gmra.mxu0 %v52
  %v164 = vpop.f32.mrf.mxu0
  %v165 = vadd.f32 %v58, %v164
  %v166 = vpop.f32.mrf.mxu0
  %v167 = vpop.f32.mrf.mxu0
  %v168 = vpop.f32.mrf.mxu0
  %169 = vdwg.mxu0
  %v170 = vxor.u32 %v165, 2147483648
  %v171 = vmul.f32 %v170, 1.442695
  %v172 = vpow.pop %v171
  %v173 = vadd.f32 %v172, 1.0
  %v174 = vrcp.pop %v173
  %v175 = vmul.f32 1.0, %v174
  %v176 = vmul.f32 %v165, %v175
  %v177 = vld [vmem:[%s3] sm:$0xf]
  %v178 = vld [vmem:[%s3 + $0x4] sm:$0xf]
  %v179 = vld [vmem:[%s3 + $0x8] sm:$0xf]
  %v180 = vld [vmem:[%s3 + $0xc] sm:$0xf]
  %v181 = vld [vmem:[%s3 + $0x10] sm:$0xf]
  %v182 = vld [vmem:[%s3 + $0x14] sm:$0xf]
  %v183 = vld [vmem:[%s3 + $0x18] sm:$0xf]
  %v184 = vld [vmem:[%s3 + $0x1c] sm:$0xf]
  %v185 = vld [vmem:[%s4] sm:$0x1]
  %v186 = vpack.c.bf16 %v176, %v176
  %v188 = vlaneseq
  %v189 = vshrl.u32 %v188, 7
  %v190 = vsub.s32 0, %v189
  %v191 = vrot.slane %v185, %v190
  %v201 = vunpack.c.l.b16 %v177
  %v202 = vunpack.c.l.b16 %v178
  %v203 = vunpack.c.l.b16 %v179
  %v204 = vunpack.c.l.b16 %v180
  %v205 = vunpack.c.l.b16 %v181
  %v206 = vunpack.c.l.b16 %v182
  %v207 = vunpack.c.l.b16 %v183
  %v208 = vunpack.c.l.b16 %v184
  %v209 = vpack.c.b16 %v202, %v201
  %v210 = vpack.c.b16 %v204, %v203
  %v211 = vpack.c.b16 %v206, %v205
  %v212 = vpack.c.b16 %v208, %v207
  %vm217 = vcmask 523264
  %v219 = vsel %vm217, %v186, 0
  %221 = vmatprep.subr.bf16.mxu0 0
  %222 = vmatpush1.bf16.msra.mxu0 0
  %223 = vmatprep.subr.bf16.mxu0 0
  %224 = vmatpush1.bf16.msra.mxu0 0
  %225 = vmatprep.subr.bf16.mxu0 0
  %226 = vmatpush1.bf16.msra.mxu0 0
  %227 = vmatprep.subr.bf16.mxu0 0
  %228 = vmatpush1.bf16.msra.mxu0 0
  %229 = vmatprep.subr.bf16.mxu0 0
  %230 = vmatpush1.bf16.msra.mxu0 %v212
  %231 = vmatprep.subr.bf16.mxu0 0
  %232 = vmatpush1.bf16.msra.mxu0 %v211
  %233 = vmatprep.subr.bf16.mxu0 0
  %234 = vmatpush1.bf16.msra.mxu0 %v210
  %235 = vmatprep.subr.bf16.mxu0 0
  %236 = vmatpush1.bf16.msra.mxu0 %v209
  %237 = vmatprep.subr.bf16.mxu0 0
  %238 = vmatpush2.bf16.msra.mxu0 0
  %239 = vmatprep.subr.bf16.mxu0 0
  %240 = vmatpush2.bf16.msra.mxu0 0
  %241 = vmatprep.subr.bf16.mxu0 0
  %242 = vmatpush2.bf16.msra.mxu0 0
  %243 = vmatprep.subr.bf16.mxu0 0
  %244 = vmatpush2.bf16.msra.mxu0 0
  %245 = vmatprep.subr.bf16.mxu0 0
  %246 = vmatpush2.bf16.msra.mxu0 0
  %247 = vmatprep.subr.bf16.mxu0 0
  %248 = vmatpush2.bf16.msra.mxu0 0
  %249 = vmatprep.subr.bf16.mxu0 0
  %250 = vmatpush2.bf16.msra.mxu0 0
  %251 = vmatprep.subr.bf16.mxu0 0
  %252 = vmatpush2.bf16.msra.mxu0 0
  %253 = vmatprep.mubr.bf16.mxu0 0
  %254 = vmatmul.mubr.bf16.gmra.mxu0 %v219
  %v255 = vpop.f32.mrf.mxu0
  %v256 = vadd.f32 %v191, %v255
  %v257 = vpop.f32.mrf.mxu0
  %v258 = vpop.f32.mrf.mxu0
  %v259 = vpop.f32.mrf.mxu0
  %260 = vdwg.mxu0
  %v261 = vxor.u32 %v256, 2147483648
  %v262 = vmul.f32 %v261, 1.442695
  %v263 = vpow.pop %v262
  %v264 = vadd.f32 %v263, 1.0
  %v265 = vrcp.pop %v264
  %v266 = vmul.f32 1.0, %v265
  %v267 = vmul.f32 %v256, %v266
  %v268 = vld [vmem:[%s5] sm:$0xf]
  %v269 = vld [vmem:[%s5 + $0x4] sm:$0xf]
  %v270 = vld [vmem:[%s5 + $0x8] sm:$0xf]
  %v271 = vld [vmem:[%s5 + $0xc] sm:$0xf]
  %v272 = vld [vmem:[%s6] sm:$0x1]
  %v273 = vpack.c.bf16 %v267, %v267
  %v275 = vlaneseq
  %v276 = vshrl.u32 %v275, 7
  %v277 = vsub.s32 0, %v276
  %v278 = vrot.slane %v272, %v277
  %v284 = vunpack.c.l.b16 %v268
  %v285 = vunpack.c.l.b16 %v269
  %v286 = vunpack.c.l.b16 %v270
  %v287 = vunpack.c.l.b16 %v271
  %v288 = vpack.c.b16 %v285, %v284
  %v289 = vpack.c.b16 %v287, %v286
  %vm292 = vcmask 261120
  %v294 = vsel %vm292, %v273, 0
  %296 = vmatprep.subr.bf16.mxu0 0
  %297 = vmatpush1.bf16.msra.mxu0 0
  %298 = vmatprep.subr.bf16.mxu0 0
  %299 = vmatpush1.bf16.msra.mxu0 0
  %300 = vmatprep.subr.bf16.mxu0 0
  %301 = vmatpush1.bf16.msra.mxu0 0
  %302 = vmatprep.subr.bf16.mxu0 0
  %303 = vmatpush1.bf16.msra.mxu0 0
  %304 = vmatprep.subr.bf16.mxu0 0
  %305 = vmatpush1.bf16.msra.mxu0 0
  %306 = vmatprep.subr.bf16.mxu0 0
  %307 = vmatpush1.bf16.msra.mxu0 0
  %308 = vmatprep.subr.bf16.mxu0 0
  %309 = vmatpush1.bf16.msra.mxu0 %v289
  %310 = vmatprep.subr.bf16.mxu0 0
  %311 = vmatpush1.bf16.msra.mxu0 %v288
  %312 = vmatprep.subr.bf16.mxu0 0
  %313 = vmatpush2.bf16.msra.mxu0 0
  %314 = vmatprep.subr.bf16.mxu0 0
  %315 = vmatpush2.bf16.msra.mxu0 0
  %316 = vmatprep.subr.bf16.mxu0 0
  %317 = vmatpush2.bf16.msra.mxu0 0
  %318 = vmatprep.subr.bf16.mxu0 0
  %319 = vmatpush2.bf16.msra.mxu0 0
  %320 = vmatprep.subr.bf16.mxu0 0
  %321 = vmatpush2.bf16.msra.mxu0 0
  %322 = vmatprep.subr.bf16.mxu0 0
  %323 = vmatpush2.bf16.msra.mxu0 0
  %324 = vmatprep.subr.bf16.mxu0 0
  %325 = vmatpush2.bf16.msra.mxu0 0
  %326 = vmatprep.subr.bf16.mxu0 0
  %327 = vmatpush2.bf16.msra.mxu0 0
  %328 = vmatprep.mubr.bf16.mxu0 0
  %329 = vmatmul.mubr.bf16.gmra.mxu0 %v294
  %v330 = vpop.f32.mrf.mxu0
  %v331 = vadd.f32 %v278, %v330
  %v332 = vpop.f32.mrf.mxu0
  %v333 = vpop.f32.mrf.mxu0
  %v334 = vpop.f32.mrf.mxu0
  %335 = vdwg.mxu0
  %336 = vst [vmem:[%s7] sm:$0xff] %v331
  // Predicated region
  $region30: #{net_forward.5} parent=0 // pred_check
    _
  $region31: #{net_forward.5} parent=0 // pred_check_branch
    %338 = sbr.rel (0) target = $region33
  $region32: #{net_forward.5} parent=0 // pred_region
    _
  $region33: #{net_forward.5} parent=0 // pred_fallthru
    _
  // Predicated region
  $region34: #{net_forward.5} parent=0 // pred_check
    _
  $region35: #{net_forward.5} parent=0 // pred_check_branch
    %340 = sbr.rel (0) target = $region37
  $region36: #{net_forward.5} parent=0 // pred_region
    _
  $region37: #{net_forward.5} parent=0 // pred_fallthru
    _

</llo_original>
